<compile_context>
chip_gen: v5e
topology: v5e:2x2
jax: 0.10.0
libtpu: 0.0.40
codegen_flags: <defaults>
</compile_context>

<pallas_src>
import functools
import math

import jax
import jax.numpy as jnp
from jax.experimental import pallas as pl
from jax.experimental.pallas import tpu as pltpu


def _round_up(x, m):
    return ((x + m - 1) // m) * m


# ----------------------------- Pallas LSTM kernel -----------------------------

def _lstm_chunk_kernel(gx_ref, whh_hbm, h0_ref, c0_ref,
                       y_ref, hn_ref, cn_ref,
                       whh_vmem, h_carry, c_carry, dma_sem,
                       *, t_chunk, hid_p, seq_len):
    """One grid step == one chunk of `t_chunk` timesteps.

    gx_ref  : (t_chunk, B_p, 4*H_p)  precomputed x@W_ih^T + bias chunk (bf16), pipelined
    whh_hbm : (H_p, 4*H_p)           W_hh^T in HBM (memory_space=ANY, bf16)
    h0_ref  : (B_p, H_p)             initial hidden state (f32)
    c0_ref  : (B_p, H_p)             initial cell state   (f32)
    y_ref   : (t_chunk, B_p, H_p)    per-timestep outputs for this chunk (bf16)
    hn_ref  : (B_p, H_p)             final hidden state (written on last chunk only)
    cn_ref  : (B_p, H_p)             final cell state   (written on last chunk only)
    whh_vmem: VMEM scratch (H_p, 4*H_p) -- single resident copy of W_hh^T
    h_carry : VMEM scratch (B_p, H_p) f32 -- recurrence carry across grid steps
    c_carry : VMEM scratch (B_p, H_p) f32
    dma_sem : scalar DMA semaphore for the one-time W_hh copy
    """
    c_idx = pl.program_id(0)
    n_chunks = pl.num_programs(0)

    # First grid step: bring the single resident copy of W_hh into VMEM and seed
    # the carry scratch from the provided initial state.
    @pl.when(c_idx == 0)
    def _init():
        cp = pltpu.make_async_copy(whh_hbm, whh_vmem, dma_sem)
        cp.start()
        h_carry[...] = h0_ref[...]
        c_carry[...] = c0_ref[...]
        cp.wait()

    w_dtype = whh_vmem.dtype
    full_chunk = (seq_len % t_chunk == 0)   # static: no masking if divisible

    def step(t, carry):
        h, c = carry
        # Only h @ W_hh^T stays inside the serial loop; the x projection (incl. bias)
        # was hoisted into gx.  Keep the add adjacent to the dot (f32 accumulate).
        gates = jnp.dot(h.astype(w_dtype), whh_vmem[...],
                        preferred_element_type=jnp.float32) + gx_ref[t, :, :]
        # PyTorch gate order (i, f, g, o); each slice is lane-aligned (H_p % 128 == 0).
        i_g = jax.nn.sigmoid(gates[:, 0 * hid_p:1 * hid_p])
        f_g = jax.nn.sigmoid(gates[:, 1 * hid_p:2 * hid_p])
        g_g = jnp.tanh(gates[:, 2 * hid_p:3 * hid_p])
        o_g = jax.nn.sigmoid(gates[:, 3 * hid_p:4 * hid_p])
        c_new = f_g * c + i_g * g_g
        h_new = o_g * jnp.tanh(c_new)
        y_ref[t, :, :] = h_new.astype(y_ref.dtype)
        if full_chunk:
            return h_new, c_new
        # Sequence length not divisible by chunk: freeze the carry past the end.
        valid = (c_idx * t_chunk + t) < seq_len
        return jnp.where(valid, h_new, h), jnp.where(valid, c_new, c)

    unroll = True if t_chunk <= 8 else 4   # modest unroll for long chunks
    h_fin, c_fin = jax.lax.fori_loop(
        0, t_chunk, step, (h_carry[...], c_carry[...]), unroll=unroll)
    h_carry[...] = h_fin
    c_carry[...] = c_fin

    @pl.when(c_idx == n_chunks - 1)
    def _finalize():
        hn_ref[...] = h_fin
        cn_ref[...] = c_fin


def lstm_layer_pallas(x3, wih_t_p, whh_t_p, bias_p, h0_p, c0_p, *, t_chunk, seq_len):
    """Run one LSTM layer over a full (padded) sequence.

    x3     : (S_pad, B_p, In_p)  activations (bf16), zero-padded
    wih_t_p: (In_p, 4*H_p)  bf16 (padded, transposed)  -- used only in the hoisted matmul
    whh_t_p: (H_p, 4*H_p)   bf16 (padded, transposed)
    bias_p : (1, 4*H_p)     f32  (b_ih + b_hh, padded)
    h0_p/c0_p: (B_p, H_p)   f32
    returns y (S_pad, B_p, H_p) bf16, h_n (B_p, H_p) f32, c_n (B_p, H_p) f32
    """
    s_pad, b_p, _ = x3.shape
    hid_p = h0_p.shape[1]
    n_chunks = s_pad // t_chunk
    act_dtype = x3.dtype

    # ---- Hoisted whole-sequence input projection (one big MXU matmul in XLA) -----
    # Stored in bf16 to halve HBM traffic into the recurrence kernel.
    gx = (jnp.dot(x3, wih_t_p, preferred_element_type=jnp.float32)
          + bias_p).astype(act_dtype)                     # (S_pad, B_p, 4*H_p)

    kernel = functools.partial(
        _lstm_chunk_kernel, t_chunk=t_chunk, hid_p=hid_p, seq_len=seq_len)

    # VMEM footprint: double-buffered gx & y blocks + single W_hh copy + small state.
    act_bytes = jnp.dtype(act_dtype).itemsize
    gx_blk = t_chunk * b_p * 4 * hid_p * act_bytes
    y_blk = t_chunk * b_p * hid_p * act_bytes
    whh_bytes = hid_p * 4 * hid_p * jnp.dtype(whh_t_p.dtype).itemsize
    state_bytes = b_p * hid_p * 4
    footprint = 2 * gx_blk + 2 * y_blk + whh_bytes + 10 * state_bytes
    # Cap at 64 MB so the same setting is safe on v7x (64 MiB physical VMEM).
    vmem_limit = int(min(max(1.25 * footprint + (4 << 20), 16 << 20), 64 << 20))

    grid_spec = pltpu.PrefetchScalarGridSpec(
        num_scalar_prefetch=0,
        grid=(n_chunks,),
        in_specs=[
            pl.BlockSpec((t_chunk, b_p, 4 * hid_p), lambda c: (c, 0, 0)),  # gx chunk
            pl.BlockSpec(memory_space=pl.ANY),                             # W_hh^T (HBM)
            pl.BlockSpec((b_p, hid_p), lambda c: (0, 0)),                  # h0
            pl.BlockSpec((b_p, hid_p), lambda c: (0, 0)),                  # c0
        ],
        out_specs=[
            pl.BlockSpec((t_chunk, b_p, hid_p), lambda c: (c, 0, 0)),      # y chunk
            pl.BlockSpec((b_p, hid_p), lambda c: (0, 0)),                  # h_n
            pl.BlockSpec((b_p, hid_p), lambda c: (0, 0)),                  # c_n
        ],
        scratch_shapes=[
            pltpu.VMEM((hid_p, 4 * hid_p), whh_t_p.dtype),  # single resident W_hh copy
            pltpu.VMEM((b_p, hid_p), jnp.float32),          # h carry
            pltpu.VMEM((b_p, hid_p), jnp.float32),          # c carry
            pltpu.SemaphoreType.DMA(()),                    # one-time W_hh DMA
        ],
    )

    y, h_n, c_n = pl.pallas_call(
        kernel,
        out_shape=(
            jax.ShapeDtypeStruct((s_pad, b_p, hid_p), act_dtype),
            jax.ShapeDtypeStruct((b_p, hid_p), jnp.float32),
            jax.ShapeDtypeStruct((b_p, hid_p), jnp.float32),
        ),
        grid_spec=grid_spec,
        compiler_params=pltpu.CompilerParams(
            dimension_semantics=("arbitrary",),   # time recurrence is sequential
            vmem_limit_bytes=vmem_limit,
        ),
    )(gx, whh_t_p, h0_p, c0_p)
    return y, h_n, c_n


# ------------------------------- Model container -------------------------------

class RNNModelPallas:
    """JAX/Pallas equivalent of RNNModel(rnn_type='LSTM') in eval mode."""

    def __init__(self, ntoken, ninp, nhid, nlayers, tie_weights=False, seed=0,
                 weight_dtype=jnp.bfloat16, act_dtype=jnp.bfloat16,
                 target_rows_per_chunk=512):
        self.ntoken, self.ninp, self.nhid, self.nlayers = ntoken, ninp, nhid, nlayers
        self.tie_weights = tie_weights
        self.weight_dtype = weight_dtype
        self.act_dtype = act_dtype
        self._target_rows_per_chunk = target_rows_per_chunk   # gx/y rows per time chunk

        key = jax.random.PRNGKey(seed)
        k_enc, k_dec, key = jax.random.split(key, 3)

        initrange = 0.1
        # encoder.weight ~ U(-0.1, 0.1)
        self.encoder_weight = jax.random.uniform(
            k_enc, (ntoken, ninp), jnp.float32, -initrange, initrange)
        # decoder (present in the module but NOT used in forward())
        self.decoder_weight = jax.random.uniform(
            k_dec, (ntoken, nhid), jnp.float32, -initrange, initrange)
        self.decoder_bias = jnp.zeros((ntoken,), jnp.float32)

        # LSTM layers: input_size = ninp if l==0 else nhid,
        #              hidden_size = nhid except last layer (ninp if tie_weights)
        self.layer_sizes = []     # (in_sz, hid_sz) per layer (logical)
        self.padded_sizes = []    # (in_p, hid_p) per layer (lane-padded)
        self.lstm_params = []     # raw PyTorch-layout f32 params (for reference)
        self.kernel_params = []   # padded / transposed / bf16 params for the kernel
        for l in range(nlayers):
            in_sz = ninp if l == 0 else nhid
            hid_sz = nhid if l != nlayers - 1 else (ninp if tie_weights else nhid)
            self.layer_sizes.append((in_sz, hid_sz))
            in_p = _round_up(in_sz, 128)
            hid_p = _round_up(hid_sz, 128)
            self.padded_sizes.append((in_p, hid_p))

            stdv = 1.0 / math.sqrt(hid_sz)
            key, k1, k2, k3, k4 = jax.random.split(key, 5)
            w_ih = jax.random.uniform(k1, (4 * hid_sz, in_sz), jnp.float32, -stdv, stdv)
            w_hh = jax.random.uniform(k2, (4 * hid_sz, hid_sz), jnp.float32, -stdv, stdv)
            b_ih = jax.random.uniform(k3, (4 * hid_sz,), jnp.float32, -stdv, stdv)
            b_hh = jax.random.uniform(k4, (4 * hid_sz,), jnp.float32, -stdv, stdv)
            self.lstm_params.append((w_ih, w_hh, b_ih, b_hh))

            # Precompute padded + transposed weights and combined bias.  Each PyTorch
            # gate block g*H:(g+1)*H lands in its own lane-aligned H_p slot; pad
            # rows/cols/bias are zero so pad *lanes* of h/c stay exactly 0 (pad batch
            # rows are merely bounded, independent, and sliced off).
            wih_t_p = jnp.zeros((in_p, 4 * hid_p), jnp.float32)
            whh_t_p = jnp.zeros((hid_p, 4 * hid_p), jnp.float32)
            bias_p = jnp.zeros((1, 4 * hid_p), jnp.float32)
            for g in range(4):
                wih_t_p = wih_t_p.at[:in_sz, g * hid_p:g * hid_p + hid_sz].set(
                    w_ih[g * hid_sz:(g + 1) * hid_sz, :].T)
                whh_t_p = whh_t_p.at[:hid_sz, g * hid_p:g * hid_p + hid_sz].set(
                    w_hh[g * hid_sz:(g + 1) * hid_sz, :].T)
                bias_p = bias_p.at[0, g * hid_p:g * hid_p + hid_sz].set(
                    b_ih[g * hid_sz:(g + 1) * hid_sz] + b_hh[g * hid_sz:(g + 1) * hid_sz])
            self.kernel_params.append(
                (wih_t_p.astype(weight_dtype), whh_t_p.astype(weight_dtype), bias_p))

    def init_hidden(self, bsz):
        return [
            (jnp.zeros((1, bsz, hid), jnp.float32),
             jnp.zeros((1, bsz, hid), jnp.float32))
            for (_, hid) in self.layer_sizes
        ]

    def _pick_time_chunk(self, seq, b_p):
        tc = max(1, min(seq, self._target_rows_per_chunk // b_p))
        # Prefer a chunk length that divides seq_len so every chunk takes the
        # select-free fast path in the hot serial loop.
        for d in range(tc, 0, -1):
            if seq % d == 0:
                if d >= max(1, tc // 2):
                    return d
                break
        return tc

    def forward(self, tokens, hidden, return_h=False):
        """tokens: (seq_len, batch) int32; hidden: list of (h, c), each (1, B, H)."""
        seq, bsz = tokens.shape

        # Embedding lookup (glue; eval mode => embedded_dropout / lockdrop are identity).
        emb = jnp.take(self.encoder_weight, tokens, axis=0)          # (S, B, ninp) f32

        b_p = max(8, _round_up(bsz, 8))
        t_chunk = self._pick_time_chunk(seq, b_p)
        s_pad = _round_up(seq, t_chunk)

        # Pad to (S_pad, B_p, In_p) with zeros; keep 3-D (time, batch, feat) so all
        # in-kernel accesses index the leading (non-tiled) axis.
        in_p0, _ = self.padded_sizes[0]
        x3 = jnp.zeros((s_pad, b_p, in_p0), self.act_dtype)
        x3 = x3.at[:seq, :bsz, :self.ninp].set(emb.astype(self.act_dtype))

        new_hidden, raw_outputs, outputs = [], [], []
        out_sliced = None
        for l in range(self.nlayers):
            in_sz, hid_sz = self.layer_sizes[l]
            wih_t_p, whh_t_p, bias_p = self.kernel_params[l]
            _, hid_p = self.padded_sizes[l]

            h0 = hidden[l][0][0]                                     # (B, H)
            c0 = hidden[l][1][0]
            h0_p = jnp.zeros((b_p, hid_p), jnp.float32).at[:bsz, :hid_sz].set(h0)
            c0_p = jnp.zeros((b_p, hid_p), jnp.float32).at[:bsz, :hid_sz].set(c0)

            y3, hn_p, cn_p = lstm_layer_pallas(
                x3, wih_t_p, whh_t_p, bias_p, h0_p, c0_p,
                t_chunk=t_chunk, seq_len=seq)

            new_hidden.append((hn_p[:bsz, :hid_sz][None], cn_p[:bsz, :hid_sz][None]))
            out_sliced = y3[:seq, :bsz, :hid_sz].astype(jnp.float32)
            raw_outputs.append(out_sliced)
            if l != self.nlayers - 1:
                outputs.append(out_sliced)   # lockdrop is identity in eval mode

            # Chain padded bf16 activations directly into the next layer
            # (in_p(l+1) == hid_p(l) by construction; pad lanes are exactly zero).
            x3 = y3

        output = out_sliced
        outputs.append(output)
        result = output.reshape(output.shape[0] * output.shape[1], output.shape[2])
        if return_h:
            return result, new_hidden, raw_outputs, outputs
        return result, new_hidden


# ------------------------------ Pure-JAX reference ------------------------------

def _lstm_layer_ref(x, w_ih, w_hh, b_ih, b_hh, h0, c0):
    hid = h0.shape[-1]

    def step(carry, x_t):
        h, c = carry
        gates = x_t @ w_ih.T + h @ w_hh.T + b_ih + b_hh
        i = jax.nn.sigmoid(gates[:, 0 * hid:1 * hid])
        f = jax.nn.sigmoid(gates[:, 1 * hid:2 * hid])
        g = jnp.tanh(gates[:, 2 * hid:3 * hid])
        o = jax.nn.sigmoid(gates[:, 3 * hid:4 * hid])
        c = f * c + i * g
        h = o * jnp.tanh(c)
        return (h, c), h

    (h_n, c_n), ys = jax.lax.scan(step, (h0, c0), x)
    return ys, h_n, c_n


def _forward_ref(model, tokens, hidden):
    y = jnp.take(model.encoder_weight, tokens, axis=0)
    new_hidden = []
    for l, (w_ih, w_hh, b_ih, b_hh) in enumerate(model.lstm_params):
        # Match the kernel's bf16 weight quantization (f32 math otherwise).
        w_ih = w_ih.astype(model.weight_dtype).astype(jnp.float32)
        w_hh = w_hh.astype(model.weight_dtype).astype(jnp.float32)
        y, h_n, c_n = _lstm_layer_ref(y, w_ih, w_hh, b_ih, b_hh,
                                      hidden[l][0][0], hidden[l][1][0])
        new_hidden.append((h_n[None], c_n[None]))
    return y.reshape(y.shape[0] * y.shape[1], y.shape[2]), new_hidden


# ------------------------------------ Main ------------------------------------

if __name__ == "__main__":
    ntoken, ninp, nhid, nlayers = 50, 32, 32, 2
    seq_len, bsz = 8, 2

    # Small chunk target so this tiny test exercises multi-chunk carry chaining
    # (t_chunk=4 -> 2 grid steps); the production default is 512 rows per chunk.
    model = RNNModelPallas(ntoken, ninp, nhid, nlayers, tie_weights=False, seed=0,
                           target_rows_per_chunk=32)

    key = jax.random.PRNGKey(0)
    tokens = jax.random.randint(key, (seq_len, bsz), 0, ntoken, dtype=jnp.int32)
    hidden = model.init_hidden(bsz)

    result, new_hidden = model.forward(tokens, hidden)
    result = jax.block_until_ready(result)
    jax.block_until_ready(new_hidden)

    assert result.shape == (seq_len * bsz, nhid)
    assert len(new_hidden) == nlayers
    assert new_hidden[0][0].shape == (1, bsz, nhid)
    assert new_hidden[0][1].shape == (1, bsz, nhid)

    # Numerical check against a pure-JAX lax.scan LSTM reference (bf16 weights,
    # f32 math -> tolerance covers the kernel's bf16 gx / activation quantization).
    ref_result, ref_hidden = _forward_ref(model, tokens, hidden)
    ref_result = jax.block_until_ready(ref_result)
    assert jnp.allclose(result, ref_result, atol=2e-2, rtol=2e-2), "output mismatch"
    for l in range(nlayers):
        assert jnp.allclose(new_hidden[l][0], ref_hidden[l][0], atol=2e-2, rtol=2e-2), \
            f"h_n mismatch at layer {l}"
        assert jnp.allclose(new_hidden[l][1], ref_hidden[l][1], atol=2e-2, rtol=2e-2), \
            f"c_n mismatch at layer {l}"

    # Also exercise the partial-final-chunk (masked carry) path: seq=7 with t_chunk=4.
    tokens7 = jax.random.randint(jax.random.PRNGKey(1), (7, bsz), 0, ntoken,
                                 dtype=jnp.int32)
    hidden7 = model.init_hidden(bsz)
    res7, hid7 = model.forward(tokens7, hidden7)
    res7 = jax.block_until_ready(res7)
    ref_res7, ref_hid7 = _forward_ref(model, tokens7, hidden7)
    assert res7.shape == (7 * bsz, nhid)
    assert jnp.allclose(res7, ref_res7, atol=2e-2, rtol=2e-2), \
        "partial-chunk output mismatch"
    for l in range(nlayers):
        assert jnp.allclose(hid7[l][0], ref_hid7[l][0], atol=2e-2, rtol=2e-2), \
            f"partial-chunk h_n mismatch at layer {l}"
        assert jnp.allclose(hid7[l][1], ref_hid7[l][1], atol=2e-2, rtol=2e-2), \
            f"partial-chunk c_n mismatch at layer {l}"

    print("KERNEL_OK")
</pallas_src>

<mosaic_0001>
module attributes {stable_mosaic.version = 11 : i64} {
  func.func @_lstm_chunk_kernel(%arg0: i32, %arg1: memref<4x8x512xbf16, #tpu.memory_space<vmem>>, %arg2: memref<128x512xbf16, #tpu.memory_space<any>>, %arg3: memref<8x128xf32, #tpu.memory_space<vmem>>, %arg4: memref<8x128xf32, #tpu.memory_space<vmem>>, %arg5: memref<4x8x128xbf16, #tpu.memory_space<vmem>>, %arg6: memref<8x128xf32, #tpu.memory_space<vmem>>, %arg7: memref<8x128xf32, #tpu.memory_space<vmem>>, %arg8: memref<128x512xbf16, #tpu.memory_space<vmem>>, %arg9: memref<8x128xf32, #tpu.memory_space<vmem>>, %arg10: memref<8x128xf32, #tpu.memory_space<vmem>>, %arg11: memref<!tpu.dma_semaphore, #tpu.memory_space<semaphore_mem>>) attributes {dimension_semantics = [#tpu.dimension_semantics<arbitrary>], iteration_bounds = array<i64: 2>, scalar_prefetch = 0 : i64, scratch_operands = 4 : i64, tpu.core_type = #tpu.core_type<tc>, window_params = [{transform_indices = @transform_0, window_bounds = array<i64: 4, 8, 512>}, {}, {pipeline_mode = #tpu.pipeline_mode<synchronous>, transform_indices = @transform_2, window_bounds = array<i64: 8, 128>}, {pipeline_mode = #tpu.pipeline_mode<synchronous>, transform_indices = @transform_3, window_bounds = array<i64: 8, 128>}, {transform_indices = @transform_4, window_bounds = array<i64: 4, 8, 128>}, {pipeline_mode = #tpu.pipeline_mode<synchronous>, transform_indices = @transform_5, window_bounds = array<i64: 8, 128>}, {pipeline_mode = #tpu.pipeline_mode<synchronous>, transform_indices = @transform_6, window_bounds = array<i64: 8, 128>}]} {
    %c0_i32 = arith.constant 0 : i32
    %0 = arith.cmpi eq, %arg0, %c0_i32 : i32
    %1 = arith.extui %0 : i1 to i32
    %c0_i32_0 = arith.constant 0 : i32
    %2 = arith.cmpi ne, %1, %c0_i32_0 : i32
    scf.if %2 {
      tpu.enqueue_dma source(%arg2 : memref<128x512xbf16, #tpu.memory_space<any>>) target(%arg8 : memref<128x512xbf16, #tpu.memory_space<vmem>>) target_semaphore(%arg11 : memref<!tpu.dma_semaphore, #tpu.memory_space<semaphore_mem>>)
      %c0_50 = arith.constant 0 : index
      %c0_51 = arith.constant 0 : index
      %162 = vector.load %arg3[%c0_50, %c0_51] : memref<8x128xf32, #tpu.memory_space<vmem>>, vector<8x128xf32>
      %c0_52 = arith.constant 0 : index
      %c0_53 = arith.constant 0 : index
      %163 = vector.load %arg9[%c0_52, %c0_53] : memref<8x128xf32, #tpu.memory_space<vmem>>, vector<8x128xf32>
      tpu.vector_store %arg9[%c0_52, %c0_53], %162 {strides = array<i32>} : memref<8x128xf32, #tpu.memory_space<vmem>>, vector<8x128xf32>,
      %c0_54 = arith.constant 0 : index
      %c0_55 = arith.constant 0 : index
      %164 = vector.load %arg4[%c0_54, %c0_55] : memref<8x128xf32, #tpu.memory_space<vmem>>, vector<8x128xf32>
      %c0_56 = arith.constant 0 : index
      %c0_57 = arith.constant 0 : index
      %165 = vector.load %arg10[%c0_56, %c0_57] : memref<8x128xf32, #tpu.memory_space<vmem>>, vector<8x128xf32>
      tpu.vector_store %arg10[%c0_56, %c0_57], %164 {strides = array<i32>} : memref<8x128xf32, #tpu.memory_space<vmem>>, vector<8x128xf32>,
      tpu.wait_dma2 semaphore(%arg11 : memref<!tpu.dma_semaphore, #tpu.memory_space<semaphore_mem>>) src(%arg2 : memref<128x512xbf16, #tpu.memory_space<any>>) dst(%arg8 : memref<128x512xbf16, #tpu.memory_space<vmem>>)
    } else {
    }
    %c0 = arith.constant 0 : index
    %c0_1 = arith.constant 0 : index
    %3 = vector.load %arg9[%c0, %c0_1] : memref<8x128xf32, #tpu.memory_space<vmem>>, vector<8x128xf32>
    %c0_2 = arith.constant 0 : index
    %c0_3 = arith.constant 0 : index
    %4 = vector.load %arg10[%c0_2, %c0_3] : memref<8x128xf32, #tpu.memory_space<vmem>>, vector<8x128xf32>
    %c0_i32_4 = arith.constant 0 : i32
    %5 = arith.truncf %3 : vector<8x128xf32> to vector<8x128xbf16>
    %c0_5 = arith.constant 0 : index
    %c0_6 = arith.constant 0 : index
    %6 = vector.load %arg8[%c0_5, %c0_6] : memref<128x512xbf16, #tpu.memory_space<vmem>>, vector<128x512xbf16>
    %cst = arith.constant dense<0.000000e+00> : vector<8x512xf32>
    %7 = tpu.matmul %5, %6, %cst {dimension_numbers = #tpu.dot_dimension_numbers<[1], [0], [0], [1], [0, 0, 1, 1], [], []>} : vector<8x128xbf16>, vector<128x512xbf16>, vector<8x512xf32> -> vector<8x512xf32>
    %8 = arith.index_cast %c0_i32_4 : i32 to index
    %c0_7 = arith.constant 0 : index
    %c0_8 = arith.constant 0 : index
    %9 = vector.load %arg1[%8, %c0_7, %c0_8] : memref<4x8x512xbf16, #tpu.memory_space<vmem>>, vector<1x8x512xbf16>
    %10 = vector.shape_cast %9 : vector<1x8x512xbf16> to vector<8x512xbf16>
    %11 = arith.extf %10 : vector<8x512xbf16> to vector<8x512xf32>
    %12 = arith.addf %7, %11 : vector<8x512xf32>
    %13 = vector.extract_strided_slice %12 {offsets = [0, 0], sizes = [8, 128], strides = [1, 1]} : vector<8x512xf32> to vector<8x128xf32>
    %14 = arith.negf %13 : vector<8x128xf32>
    %15 = math.exp %14 : vector<8x128xf32>
    %cst_9 = arith.constant 1.000000e+00 : f32
    %16 = vector.broadcast %cst_9 : f32 to vector<8x128xf32>
    %17 = arith.addf %16, %15 : vector<8x128xf32>
    %18 = arith.divf %16, %17 : vector<8x128xf32>
    %19 = vector.extract_strided_slice %12 {offsets = [0, 128], sizes = [8, 128], strides = [1, 1]} : vector<8x512xf32> to vector<8x128xf32>
    %20 = arith.negf %19 : vector<8x128xf32>
    %21 = math.exp %20 : vector<8x128xf32>
    %cst_10 = arith.constant 1.000000e+00 : f32
    %22 = vector.broadcast %cst_10 : f32 to vector<8x128xf32>
    %23 = arith.addf %22, %21 : vector<8x128xf32>
    %24 = arith.divf %22, %23 : vector<8x128xf32>
    %25 = vector.extract_strided_slice %12 {offsets = [0, 256], sizes = [8, 128], strides = [1, 1]} : vector<8x512xf32> to vector<8x128xf32>
    %26 = math.tanh %25 : vector<8x128xf32>
    %27 = vector.extract_strided_slice %12 {offsets = [0, 384], sizes = [8, 128], strides = [1, 1]} : vector<8x512xf32> to vector<8x128xf32>
    %28 = arith.negf %27 : vector<8x128xf32>
    %29 = math.exp %28 : vector<8x128xf32>
    %cst_11 = arith.constant 1.000000e+00 : f32
    %30 = vector.broadcast %cst_11 : f32 to vector<8x128xf32>
    %31 = arith.addf %30, %29 : vector<8x128xf32>
    %32 = arith.divf %30, %31 : vector<8x128xf32>
    %33 = arith.mulf %24, %4 : vector<8x128xf32>
    %34 = arith.mulf %18, %26 : vector<8x128xf32>
    %35 = arith.addf %33, %34 : vector<8x128xf32>
    %36 = math.tanh %35 : vector<8x128xf32>
    %37 = arith.mulf %32, %36 : vector<8x128xf32>
    %38 = arith.truncf %37 : vector<8x128xf32> to vector<8x128xbf16>
    %39 = arith.index_cast %c0_i32_4 : i32 to index
    %c0_12 = arith.constant 0 : index
    %c0_13 = arith.constant 0 : index
    %40 = vector.load %arg5[%39, %c0_12, %c0_13] : memref<4x8x128xbf16, #tpu.memory_space<vmem>>, vector<1x8x128xbf16>
    %41 = vector.shape_cast %40 : vector<1x8x128xbf16> to vector<8x128xbf16>
    %42 = vector.shape_cast %38 : vector<8x128xbf16> to vector<1x8x128xbf16>
    tpu.vector_store %arg5[%39, %c0_12, %c0_13], %42 {strides = array<i32>} : memref<4x8x128xbf16, #tpu.memory_space<vmem>>, vector<1x8x128xbf16>,
    %c1_i32 = arith.constant 1 : i32
    %43 = arith.truncf %37 : vector<8x128xf32> to vector<8x128xbf16>
    %c0_14 = arith.constant 0 : index
    %c0_15 = arith.constant 0 : index
    %44 = vector.load %arg8[%c0_14, %c0_15] : memref<128x512xbf16, #tpu.memory_space<vmem>>, vector<128x512xbf16>
    %cst_16 = arith.constant dense<0.000000e+00> : vector<8x512xf32>
    %45 = tpu.matmul %43, %44, %cst_16 {dimension_numbers = #tpu.dot_dimension_numbers<[1], [0], [0], [1], [0, 0, 1, 1], [], []>} : vector<8x128xbf16>, vector<128x512xbf16>, vector<8x512xf32> -> vector<8x512xf32>
    %46 = arith.index_cast %c1_i32 : i32 to index
    %c0_17 = arith.constant 0 : index
    %c0_18 = arith.constant 0 : index
    %47 = vector.load %arg1[%46, %c0_17, %c0_18] : memref<4x8x512xbf16, #tpu.memory_space<vmem>>, vector<1x8x512xbf16>
    %48 = vector.shape_cast %47 : vector<1x8x512xbf16> to vector<8x512xbf16>
    %49 = arith.extf %48 : vector<8x512xbf16> to vector<8x512xf32>
    %50 = arith.addf %45, %49 : vector<8x512xf32>
    %51 = vector.extract_strided_slice %50 {offsets = [0, 0], sizes = [8, 128], strides = [1, 1]} : vector<8x512xf32> to vector<8x128xf32>
    %52 = arith.negf %51 : vector<8x128xf32>
    %53 = math.exp %52 : vector<8x128xf32>
    %cst_19 = arith.constant 1.000000e+00 : f32
    %54 = vector.broadcast %cst_19 : f32 to vector<8x128xf32>
    %55 = arith.addf %54, %53 : vector<8x128xf32>
    %56 = arith.divf %54, %55 : vector<8x128xf32>
    %57 = vector.extract_strided_slice %50 {offsets = [0, 128], sizes = [8, 128], strides = [1, 1]} : vector<8x512xf32> to vector<8x128xf32>
    %58 = arith.negf %57 : vector<8x128xf32>
    %59 = math.exp %58 : vector<8x128xf32>
    %cst_20 = arith.constant 1.000000e+00 : f32
    %60 = vector.broadcast %cst_20 : f32 to vector<8x128xf32>
    %61 = arith.addf %60, %59 : vector<8x128xf32>
    %62 = arith.divf %60, %61 : vector<8x128xf32>
    %63 = vector.extract_strided_slice %50 {offsets = [0, 256], sizes = [8, 128], strides = [1, 1]} : vector<8x512xf32> to vector<8x128xf32>
    %64 = math.tanh %63 : vector<8x128xf32>
    %65 = vector.extract_strided_slice %50 {offsets = [0, 384], sizes = [8, 128], strides = [1, 1]} : vector<8x512xf32> to vector<8x128xf32>
    %66 = arith.negf %65 : vector<8x128xf32>
    %67 = math.exp %66 : vector<8x128xf32>
    %cst_21 = arith.constant 1.000000e+00 : f32
    %68 = vector.broadcast %cst_21 : f32 to vector<8x128xf32>
    %69 = arith.addf %68, %67 : vector<8x128xf32>
    %70 = arith.divf %68, %69 : vector<8x128xf32>
    %71 = arith.mulf %62, %35 : vector<8x128xf32>
    %72 = arith.mulf %56, %64 : vector<8x128xf32>
    %73 = arith.addf %71, %72 : vector<8x128xf32>
    %74 = math.tanh %73 : vector<8x128xf32>
    %75 = arith.mulf %70, %74 : vector<8x128xf32>
    %76 = arith.truncf %75 : vector<8x128xf32> to vector<8x128xbf16>
    %77 = arith.index_cast %c1_i32 : i32 to index
    %c0_22 = arith.constant 0 : index
    %c0_23 = arith.constant 0 : index
    %78 = vector.load %arg5[%77, %c0_22, %c0_23] : memref<4x8x128xbf16, #tpu.memory_space<vmem>>, vector<1x8x128xbf16>
    %79 = vector.shape_cast %78 : vector<1x8x128xbf16> to vector<8x128xbf16>
    %80 = vector.shape_cast %76 : vector<8x128xbf16> to vector<1x8x128xbf16>
    tpu.vector_store %arg5[%77, %c0_22, %c0_23], %80 {strides = array<i32>} : memref<4x8x128xbf16, #tpu.memory_space<vmem>>, vector<1x8x128xbf16>,
    %c2_i32 = arith.constant 2 : i32
    %81 = arith.truncf %75 : vector<8x128xf32> to vector<8x128xbf16>
    %c0_24 = arith.constant 0 : index
    %c0_25 = arith.constant 0 : index
    %82 = vector.load %arg8[%c0_24, %c0_25] : memref<128x512xbf16, #tpu.memory_space<vmem>>, vector<128x512xbf16>
    %cst_26 = arith.constant dense<0.000000e+00> : vector<8x512xf32>
    %83 = tpu.matmul %81, %82, %cst_26 {dimension_numbers = #tpu.dot_dimension_numbers<[1], [0], [0], [1], [0, 0, 1, 1], [], []>} : vector<8x128xbf16>, vector<128x512xbf16>, vector<8x512xf32> -> vector<8x512xf32>
    %84 = arith.index_cast %c2_i32 : i32 to index
    %c0_27 = arith.constant 0 : index
    %c0_28 = arith.constant 0 : index
    %85 = vector.load %arg1[%84, %c0_27, %c0_28] : memref<4x8x512xbf16, #tpu.memory_space<vmem>>, vector<1x8x512xbf16>
    %86 = vector.shape_cast %85 : vector<1x8x512xbf16> to vector<8x512xbf16>
    %87 = arith.extf %86 : vector<8x512xbf16> to vector<8x512xf32>
    %88 = arith.addf %83, %87 : vector<8x512xf32>
    %89 = vector.extract_strided_slice %88 {offsets = [0, 0], sizes = [8, 128], strides = [1, 1]} : vector<8x512xf32> to vector<8x128xf32>
    %90 = arith.negf %89 : vector<8x128xf32>
    %91 = math.exp %90 : vector<8x128xf32>
    %cst_29 = arith.constant 1.000000e+00 : f32
    %92 = vector.broadcast %cst_29 : f32 to vector<8x128xf32>
    %93 = arith.addf %92, %91 : vector<8x128xf32>
    %94 = arith.divf %92, %93 : vector<8x128xf32>
    %95 = vector.extract_strided_slice %88 {offsets = [0, 128], sizes = [8, 128], strides = [1, 1]} : vector<8x512xf32> to vector<8x128xf32>
    %96 = arith.negf %95 : vector<8x128xf32>
    %97 = math.exp %96 : vector<8x128xf32>
    %cst_30 = arith.constant 1.000000e+00 : f32
    %98 = vector.broadcast %cst_30 : f32 to vector<8x128xf32>
    %99 = arith.addf %98, %97 : vector<8x128xf32>
    %100 = arith.divf %98, %99 : vector<8x128xf32>
    %101 = vector.extract_strided_slice %88 {offsets = [0, 256], sizes = [8, 128], strides = [1, 1]} : vector<8x512xf32> to vector<8x128xf32>
    %102 = math.tanh %101 : vector<8x128xf32>
    %103 = vector.extract_strided_slice %88 {offsets = [0, 384], sizes = [8, 128], strides = [1, 1]} : vector<8x512xf32> to vector<8x128xf32>
    %104 = arith.negf %103 : vector<8x128xf32>
    %105 = math.exp %104 : vector<8x128xf32>
    %cst_31 = arith.constant 1.000000e+00 : f32
    %106 = vector.broadcast %cst_31 : f32 to vector<8x128xf32>
    %107 = arith.addf %106, %105 : vector<8x128xf32>
    %108 = arith.divf %106, %107 : vector<8x128xf32>
    %109 = arith.mulf %100, %73 : vector<8x128xf32>
    %110 = arith.mulf %94, %102 : vector<8x128xf32>
    %111 = arith.addf %109, %110 : vector<8x128xf32>
    %112 = math.tanh %111 : vector<8x128xf32>
    %113 = arith.mulf %108, %112 : vector<8x128xf32>
    %114 = arith.truncf %113 : vector<8x128xf32> to vector<8x128xbf16>
    %115 = arith.index_cast %c2_i32 : i32 to index
    %c0_32 = arith.constant 0 : index
    %c0_33 = arith.constant 0 : index
    %116 = vector.load %arg5[%115, %c0_32, %c0_33] : memref<4x8x128xbf16, #tpu.memory_space<vmem>>, vector<1x8x128xbf16>
    %117 = vector.shape_cast %116 : vector<1x8x128xbf16> to vector<8x128xbf16>
    %118 = vector.shape_cast %114 : vector<8x128xbf16> to vector<1x8x128xbf16>
    tpu.vector_store %arg5[%115, %c0_32, %c0_33], %118 {strides = array<i32>} : memref<4x8x128xbf16, #tpu.memory_space<vmem>>, vector<1x8x128xbf16>,
    %c3_i32 = arith.constant 3 : i32
    %119 = arith.truncf %113 : vector<8x128xf32> to vector<8x128xbf16>
    %c0_34 = arith.constant 0 : index
    %c0_35 = arith.constant 0 : index
    %120 = vector.load %arg8[%c0_34, %c0_35] : memref<128x512xbf16, #tpu.memory_space<vmem>>, vector<128x512xbf16>
    %cst_36 = arith.constant dense<0.000000e+00> : vector<8x512xf32>
    %121 = tpu.matmul %119, %120, %cst_36 {dimension_numbers = #tpu.dot_dimension_numbers<[1], [0], [0], [1], [0, 0, 1, 1], [], []>} : vector<8x128xbf16>, vector<128x512xbf16>, vector<8x512xf32> -> vector<8x512xf32>
    %122 = arith.index_cast %c3_i32 : i32 to index
    %c0_37 = arith.constant 0 : index
    %c0_38 = arith.constant 0 : index
    %123 = vector.load %arg1[%122, %c0_37, %c0_38] : memref<4x8x512xbf16, #tpu.memory_space<vmem>>, vector<1x8x512xbf16>
    %124 = vector.shape_cast %123 : vector<1x8x512xbf16> to vector<8x512xbf16>
    %125 = arith.extf %124 : vector<8x512xbf16> to vector<8x512xf32>
    %126 = arith.addf %121, %125 : vector<8x512xf32>
    %127 = vector.extract_strided_slice %126 {offsets = [0, 0], sizes = [8, 128], strides = [1, 1]} : vector<8x512xf32> to vector<8x128xf32>
    %128 = arith.negf %127 : vector<8x128xf32>
    %129 = math.exp %128 : vector<8x128xf32>
    %cst_39 = arith.constant 1.000000e+00 : f32
    %130 = vector.broadcast %cst_39 : f32 to vector<8x128xf32>
    %131 = arith.addf %130, %129 : vector<8x128xf32>
    %132 = arith.divf %130, %131 : vector<8x128xf32>
    %133 = vector.extract_strided_slice %126 {offsets = [0, 128], sizes = [8, 128], strides = [1, 1]} : vector<8x512xf32> to vector<8x128xf32>
    %134 = arith.negf %133 : vector<8x128xf32>
    %135 = math.exp %134 : vector<8x128xf32>
    %cst_40 = arith.constant 1.000000e+00 : f32
    %136 = vector.broadcast %cst_40 : f32 to vector<8x128xf32>
    %137 = arith.addf %136, %135 : vector<8x128xf32>
    %138 = arith.divf %136, %137 : vector<8x128xf32>
    %139 = vector.extract_strided_slice %126 {offsets = [0, 256], sizes = [8, 128], strides = [1, 1]} : vector<8x512xf32> to vector<8x128xf32>
    %140 = math.tanh %139 : vector<8x128xf32>
    %141 = vector.extract_strided_slice %126 {offsets = [0, 384], sizes = [8, 128], strides = [1, 1]} : vector<8x512xf32> to vector<8x128xf32>
    %142 = arith.negf %141 : vector<8x128xf32>
    %143 = math.exp %142 : vector<8x128xf32>
    %cst_41 = arith.constant 1.000000e+00 : f32
    %144 = vector.broadcast %cst_41 : f32 to vector<8x128xf32>
    %145 = arith.addf %144, %143 : vector<8x128xf32>
    %146 = arith.divf %144, %145 : vector<8x128xf32>
    %147 = arith.mulf %138, %111 : vector<8x128xf32>
    %148 = arith.mulf %132, %140 : vector<8x128xf32>
    %149 = arith.addf %147, %148 : vector<8x128xf32>
    %150 = math.tanh %149 : vector<8x128xf32>
    %151 = arith.mulf %146, %150 : vector<8x128xf32>
    %152 = arith.truncf %151 : vector<8x128xf32> to vector<8x128xbf16>
    %153 = arith.index_cast %c3_i32 : i32 to index
    %c0_42 = arith.constant 0 : index
    %c0_43 = arith.constant 0 : index
    %154 = vector.load %arg5[%153, %c0_42, %c0_43] : memref<4x8x128xbf16, #tpu.memory_space<vmem>>, vector<1x8x128xbf16>
    %155 = vector.shape_cast %154 : vector<1x8x128xbf16> to vector<8x128xbf16>
    %156 = vector.shape_cast %152 : vector<8x128xbf16> to vector<1x8x128xbf16>
    tpu.vector_store %arg5[%153, %c0_42, %c0_43], %156 {strides = array<i32>} : memref<4x8x128xbf16, #tpu.memory_space<vmem>>, vector<1x8x128xbf16>,
    %c4_i32 = arith.constant 4 : i32
    %c0_44 = arith.constant 0 : index
    %c0_45 = arith.constant 0 : index
    %157 = vector.load %arg9[%c0_44, %c0_45] : memref<8x128xf32, #tpu.memory_space<vmem>>, vector<8x128xf32>
    tpu.vector_store %arg9[%c0_44, %c0_45], %151 {strides = array<i32>} : memref<8x128xf32, #tpu.memory_space<vmem>>, vector<8x128xf32>,
    %c0_46 = arith.constant 0 : index
    %c0_47 = arith.constant 0 : index
    %158 = vector.load %arg10[%c0_46, %c0_47] : memref<8x128xf32, #tpu.memory_space<vmem>>, vector<8x128xf32>
    tpu.vector_store %arg10[%c0_46, %c0_47], %149 {strides = array<i32>} : memref<8x128xf32, #tpu.memory_space<vmem>>, vector<8x128xf32>,
    %c1_i32_48 = arith.constant 1 : i32
    %159 = arith.cmpi eq, %arg0, %c1_i32_48 : i32
    %160 = arith.extui %159 : i1 to i32
    %c0_i32_49 = arith.constant 0 : i32
    %161 = arith.cmpi ne, %160, %c0_i32_49 : i32
    scf.if %161 {
      %c0_50 = arith.constant 0 : index
      %c0_51 = arith.constant 0 : index
      %162 = vector.load %arg6[%c0_50, %c0_51] : memref<8x128xf32, #tpu.memory_space<vmem>>, vector<8x128xf32>
      tpu.vector_store %arg6[%c0_50, %c0_51], %151 {strides = array<i32>} : memref<8x128xf32, #tpu.memory_space<vmem>>, vector<8x128xf32>,
      %c0_52 = arith.constant 0 : index
      %c0_53 = arith.constant 0 : index
      %163 = vector.load %arg7[%c0_52, %c0_53] : memref<8x128xf32, #tpu.memory_space<vmem>>, vector<8x128xf32>
      tpu.vector_store %arg7[%c0_52, %c0_53], %149 {strides = array<i32>} : memref<8x128xf32, #tpu.memory_space<vmem>>, vector<8x128xf32>,
    } else {
    }
    return
  }
  func.func @transform_0(%arg0: i32) -> (i32, i32, i32) {
    %c0_i32 = arith.constant 0 : i32
    %c0_i32_0 = arith.constant 0 : i32
    %c0_i32_1 = arith.constant 0 : i32
    return %arg0, %c0_i32, %c0_i32_0 : i32, i32, i32
  }
  func.func @transform_2(%arg0: i32) -> (i32, i32) {
    %c0_i32 = arith.constant 0 : i32
    %c0_i32_0 = arith.constant 0 : i32
    %c0_i32_1 = arith.constant 0 : i32
    return %c0_i32, %c0_i32_0 : i32, i32
  }
  func.func @transform_3(%arg0: i32) -> (i32, i32) {
    %c0_i32 = arith.constant 0 : i32
    %c0_i32_0 = arith.constant 0 : i32
    %c0_i32_1 = arith.constant 0 : i32
    return %c0_i32, %c0_i32_0 : i32, i32
  }
  func.func @transform_4(%arg0: i32) -> (i32, i32, i32) {
    %c0_i32 = arith.constant 0 : i32
    %c0_i32_0 = arith.constant 0 : i32
    %c0_i32_1 = arith.constant 0 : i32
    return %arg0, %c0_i32, %c0_i32_0 : i32, i32, i32
  }
  func.func @transform_5(%arg0: i32) -> (i32, i32) {
    %c0_i32 = arith.constant 0 : i32
    %c0_i32_0 = arith.constant 0 : i32
    %c0_i32_1 = arith.constant 0 : i32
    return %c0_i32, %c0_i32_0 : i32, i32
  }
  func.func @transform_6(%arg0: i32) -> (i32, i32) {
    %c0_i32 = arith.constant 0 : i32
    %c0_i32_0 = arith.constant 0 : i32
    %c0_i32_1 = arith.constant 0 : i32
    return %c0_i32, %c0_i32_0 : i32, i32
  }
}

</mosaic_0001>

<llo_original>
// kernel: tpu_custom_call.1
$region0: #{tpu_custom_call.1}
  #allocation0 [shape = 'u32[]', space=smem, size = 0x4, offset = 0x4, fixed_abs, tag = 'smem constant byte address 0x4 - core index']
  #allocation1 [shape = 'u32[72,128]{1,0:T(1,128)}', space=vmem, size = 0x9000, scoped, tag = 'internal scratch']
  #allocation2 [shape = 'bf16[128,512]{1,0:T(8,128)(2,1)}', space=vmem, size = 0x20000, scoped, tag = 'scratch operand']
  #allocation3 [shape = 'f32[8,128]{1,0:T(8,128)}', space=vmem, size = 0x1000, scoped, tag = 'scratch operand']
  #allocation4 [shape = 'f32[8,128]{1,0:T(8,128)}', space=vmem, size = 0x1000, scoped, tag = 'scratch operand']
  #allocation5 [shape = 's32[1]{0}', space=sflag, size = 0x4, scoped, tag = 'scratch operand']
  #allocation16 [shape = 's32[]', space=sflag, size = 0x4, offset = 0, fixed_abs, tag = 'sflag constant byte address 0x0 - dummy sync flag']
  #allocation17 [shape = 's32[]', space=sflag, size = 0x4, offset = 0, fixed_abs, tag = 'sflag constant byte address 0x0 - dummy sync flag']
  #allocation18 [shape = 'u32[]', space=smem, size = 0x4, offset = 0x44, fixed_abs, tag = 'smem constant byte address 0x44 - assertion arg 0']
  #allocation19 [shape = 'u32[]', space=smem, size = 0x4, offset = 0x48, fixed_abs, tag = 'smem constant byte address 0x48 - assertion arg 1']
  %s0 = inlined_call_operand.hbm [shape: bf16[8,8,512], index: 0, kind: input, shape index: {}]
  %s1 = inlined_call_operand.hbm [shape: bf16[128,512], index: 1, kind: input, shape index: {}]
  %s2 = inlined_call_operand.hbm [shape: f32[8,128], index: 2, kind: input, shape index: {}]
  %s3 = inlined_call_operand.hbm [shape: f32[8,128], index: 3, kind: input, shape index: {}]
  %s4 = inlined_call_operand.hbm [shape: bf16[8,8,128], index: 4, kind: output, shape index: {0}]
  %s5 = inlined_call_operand.hbm [shape: f32[8,128], index: 5, kind: output, shape index: {1}]
  %s6 = inlined_call_operand.hbm [shape: f32[8,128], index: 6, kind: output, shape index: {2}]
  %7 = xla_tuple %s4, %s5, %s6
  %s8 = sld [smem:[#allocation0]]
  $region85: #{tpu_custom_call.1} parent=0
    _
  %s10 = ssub.s32 1, %s8
  %s11 = scalar_select 0, %s10, %s8
  $region1: #{tpu_custom_call.1} parent=0
    #allocation6 [shape = 'u8[65536]{0}', space=vmem, size = 0x10000, scoped, tag = 'input window, operand 0']
    #allocation7 [shape = 's32[2]{0}', space=sflag, size = 0x8, scoped, tag = 'scoped memory for tpu_custom_call.1']
    #allocation8 [shape = 's32[2]{0}', space=sflag, size = 0x8, scoped, tag = 'scoped memory for tpu_custom_call.1']
    #allocation9 [shape = 'u8[4096]{0}', space=vmem, size = 0x1000, scoped, tag = 'input window, operand 2, single buffered']
    #allocation10 [shape = 's32[1]{0}', space=sflag, size = 0x4, scoped, tag = 'scoped memory for tpu_custom_call.1']
    #allocation11 [shape = 'u8[4096]{0}', space=vmem, size = 0x1000, scoped, tag = 'input window, operand 3, single buffered']
    #allocation12 [shape = 'u8[16384]{0}', space=vmem, size = 0x4000, scoped, tag = 'output window, operand 0']
    #allocation13 [shape = 'u8[4096]{0}', space=vmem, size = 0x1000, scoped, tag = 'output window, operand 1, single buffered']
    #allocation14 [shape = 's32[1]{0}', space=sflag, size = 0x4, scoped, tag = 'scoped memory for tpu_custom_call.1']
    #allocation15 [shape = 'u8[4096]{0}', space=vmem, size = 0x1000, scoped, tag = 'output window, operand 2, single buffered']
    %12 = vsyncpa [#allocation7], 0
    %s13 = scalar_lea.sflag [#allocation7], 1
    %14 = vsyncpa %s13, 0
    %15 = vsyncpa [#allocation10], 0
    %16 = vsyncpa [#allocation8], 0
    %s17 = scalar_lea.sflag [#allocation8], 1
    %18 = vsyncpa %s17, 0
    %19 = vsyncpa [#allocation14], 0
    loop: start=0, step=1, limit=4
    $region2: #{tpu_custom_call.1} parent=1 // loop_pre_header
      _
    $region3: #{tpu_custom_call.1} parent=1 // loop_header
      %s21 = sphi 0, %s25
      %p22 = scmp.ge.s32.totalorder %s21, 4
      %s31 = sphi 0, %s33
      %s34 = sphi 0, %s31
      %s35 = sphi 0, %s34
      %s51 = sphi 0, %s35
      %s55 = sphi 0, %s55
      %s57 = sphi 0, %s55
      %s58 = sphi 0, %s57
      %s72 = sphi 0, %s58
      %s76 = sphi 0, %s76
      %s78 = sphi 0, %s76
      %s79 = sphi 0, %s78
      %s93 = sphi 0, %s79
      %s99 = sphi 0, %s101
      %s102 = sphi 0, %s99
      %s103 = sphi 0, %s102
      %s119 = sphi 0, %s103
      %s123 = sphi 0, %s123
      %s125 = sphi 0, %s123
      %s126 = sphi 0, %s125
      %s140 = sphi 0, %s126
      %s144 = sphi 0, %s144
      %s146 = sphi 0, %s144
      %s147 = sphi 0, %s146
      %s161 = sphi 0, %s147
    $region4: #{tpu_custom_call.1} parent=1 // loop_header_branch
      %24 = sbr.rel (%p22) target = $region8
    $region5: #{tpu_custom_call.1} parent=1 // loop_body
      %s26 = ssub.s32 %s21, 1
      %s27 = ssub.s32 %s21, 2
      %s28 = sadd.s32 %s21, 1
      %s29 = ssub.s32 %s21, %s28
      %p30 = scmp.eq.s32.totalorder %s29, 0
      %s32 = sadd.s32 %s31, 1
      %s33 = scalar_select %p30, %s31, %s32
      %p36 = pneg %p30
      %p37 = scmp.eq.s32.totalorder %s21, 1
      %p38 = por %p36, %p37
      %p39 = scmp.ne.s32.totalorder %s31, %s34
      %p40 = scmp.eq.s32.totalorder %s21, 0
      %p41 = por %p39, %p40
      %p42 = scmp.ne.s32.totalorder %s31, %s34
      %p43 = scmp.eq.s32.totalorder %s26, 1
      %p44 = por %p42, %p43
      %p45 = scmp.ne.s32.totalorder %s34, %s35
      %p46 = scmp.eq.s32.totalorder %s26, 0
      %p47 = por %p45, %p46
      %p48 = scmp.ne.s32.totalorder %s34, %s35
      %p49 = scmp.eq.s32.totalorder %s27, 1
      %p50 = por %p48, %p49
      %p52 = scmp.ne.s32.totalorder %s35, %s51
      %p53 = scmp.eq.s32.totalorder %s27, 0
      %p54 = por %p52, %p53
      %s56 = sadd.s32 %s55, 1
      %p59 = scmp.eq.s32.totalorder %s21, 1
      %p60 = scmp.ne.s32.totalorder %s55, %s57
      %p61 = scmp.eq.s32.totalorder %s21, 0
      %p62 = por %p60, %p61
      %p63 = scmp.ne.s32.totalorder %s55, %s57
      %p64 = scmp.eq.s32.totalorder %s26, 1
      %p65 = por %p63, %p64
      %p66 = scmp.ne.s32.totalorder %s57, %s58
      %p67 = scmp.eq.s32.totalorder %s26, 0
      %p68 = por %p66, %p67
      %p69 = scmp.ne.s32.totalorder %s57, %s58
      %p70 = scmp.eq.s32.totalorder %s27, 1
      %p71 = por %p69, %p70
      %p73 = scmp.ne.s32.totalorder %s58, %s72
      %p74 = scmp.eq.s32.totalorder %s27, 0
      %p75 = por %p73, %p74
      %s77 = sadd.s32 %s76, 1
      %p80 = scmp.eq.s32.totalorder %s21, 1
      %p81 = scmp.ne.s32.totalorder %s76, %s78
      %p82 = scmp.eq.s32.totalorder %s21, 0
      %p83 = por %p81, %p82
      %p84 = scmp.ne.s32.totalorder %s76, %s78
      %p85 = scmp.eq.s32.totalorder %s26, 1
      %p86 = por %p84, %p85
      %p87 = scmp.ne.s32.totalorder %s78, %s79
      %p88 = scmp.eq.s32.totalorder %s26, 0
      %p89 = por %p87, %p88
      %p90 = scmp.ne.s32.totalorder %s78, %s79
      %p91 = scmp.eq.s32.totalorder %s27, 1
      %p92 = por %p90, %p91
      %p94 = scmp.ne.s32.totalorder %s79, %s93
      %p95 = scmp.eq.s32.totalorder %s27, 0
      %p96 = por %p94, %p95
      %s97 = ssub.s32 %s21, %s28
      %p98 = scmp.eq.s32.totalorder %s97, 0
      %s100 = sadd.s32 %s99, 1
      %s101 = scalar_select %p98, %s99, %s100
      %p104 = pneg %p98
      %p105 = scmp.eq.s32.totalorder %s21, 1
      %p106 = por %p104, %p105
      %p107 = scmp.ne.s32.totalorder %s99, %s102
      %p108 = scmp.eq.s32.totalorder %s21, 0
      %p109 = por %p107, %p108
      %p110 = scmp.ne.s32.totalorder %s99, %s102
      %p111 = scmp.eq.s32.totalorder %s26, 1
      %p112 = por %p110, %p111
      %p113 = scmp.ne.s32.totalorder %s102, %s103
      %p114 = scmp.eq.s32.totalorder %s26, 0
      %p115 = por %p113, %p114
      %p116 = scmp.ne.s32.totalorder %s102, %s103
      %p117 = scmp.eq.s32.totalorder %s27, 1
      %p118 = por %p116, %p117
      %p120 = scmp.ne.s32.totalorder %s103, %s119
      %p121 = scmp.eq.s32.totalorder %s27, 0
      %p122 = por %p120, %p121
      %s124 = sadd.s32 %s123, 1
      %p127 = scmp.eq.s32.totalorder %s21, 1
      %p128 = scmp.ne.s32.totalorder %s123, %s125
      %p129 = scmp.eq.s32.totalorder %s21, 0
      %p130 = por %p128, %p129
      %p131 = scmp.ne.s32.totalorder %s123, %s125
      %p132 = scmp.eq.s32.totalorder %s26, 1
      %p133 = por %p131, %p132
      %p134 = scmp.ne.s32.totalorder %s125, %s126
      %p135 = scmp.eq.s32.totalorder %s26, 0
      %p136 = por %p134, %p135
      %p137 = scmp.ne.s32.totalorder %s125, %s126
      %p138 = scmp.eq.s32.totalorder %s27, 1
      %p139 = por %p137, %p138
      %p141 = scmp.ne.s32.totalorder %s126, %s140
      %p142 = scmp.eq.s32.totalorder %s27, 0
      %p143 = por %p141, %p142
      %s145 = sadd.s32 %s144, 1
      %p148 = scmp.eq.s32.totalorder %s21, 1
      %p149 = scmp.ne.s32.totalorder %s144, %s146
      %p150 = scmp.eq.s32.totalorder %s21, 0
      %p151 = por %p149, %p150
      %p152 = scmp.ne.s32.totalorder %s144, %s146
      %p153 = scmp.eq.s32.totalorder %s26, 1
      %p154 = por %p152, %p153
      %p155 = scmp.ne.s32.totalorder %s146, %s147
      %p156 = scmp.eq.s32.totalorder %s26, 0
      %p157 = por %p155, %p156
      %p158 = scmp.ne.s32.totalorder %s146, %s147
      %p159 = scmp.eq.s32.totalorder %s27, 1
      %p160 = por %p158, %p159
      %p162 = scmp.ne.s32.totalorder %s147, %s161
      %p163 = scmp.eq.s32.totalorder %s27, 0
      %p164 = por %p162, %p163
      %p165 = scmp.le.s32.totalorder 1, %s21
      %p166 = scmp.lt.s32.totalorder %s21, 3
      %p167 = pnand %p165, %p166
      %p168 = pneg %p167
      // Predicated region
      $region9: #{tpu_custom_call.1} parent=5 // pred_check
        _
      $region10: #{tpu_custom_call.1} parent=5 // pred_check_branch
        %170 = sbr.rel (%p167) target = $region12
      $region11: #{tpu_custom_call.1} parent=5 // pred_region
        %s171 = ssub.s32 %s21, 1
        // Predicated region
        $region13: #{tpu_custom_call.1} parent=11 // pred_check
          %p172 = pneg %p68
        $region14: #{tpu_custom_call.1} parent=11 // pred_check_branch
          %174 = sbr.rel (%p172) target = $region16
        $region15: #{tpu_custom_call.1} parent=11 // pred_region
          %176 = vsyncadd [#allocation10], 0
          %s178 = sshll.u32 %s2, 4
          %s179 = int_to_ptr.hbm [resolvable:$true] %s178
          %s180 = sshll.u32 [#allocation9], 4
          %s181 = int_to_ptr.vmem [resolvable:$true] %s180
          %183 = dma.hbm_to_vmem [thread:$0]  %s179, 128, %s181, [#allocation10]
        $region16: #{tpu_custom_call.1} parent=11 // pred_fallthru
          _
        // Predicated region
        $region17: #{tpu_custom_call.1} parent=11 // pred_check
          %p184 = pneg %p89
        $region18: #{tpu_custom_call.1} parent=11 // pred_check_branch
          %186 = sbr.rel (%p184) target = $region20
        $region19: #{tpu_custom_call.1} parent=11 // pred_region
          %188 = vsyncadd [#allocation10], 0
          %s190 = sshll.u32 %s3, 4
          %s191 = int_to_ptr.hbm [resolvable:$true] %s190
          %s192 = sshll.u32 [#allocation11], 4
          %s193 = int_to_ptr.vmem [resolvable:$true] %s192
          %195 = dma.hbm_to_vmem [thread:$0]  %s191, 128, %s193, [#allocation10]
        $region20: #{tpu_custom_call.1} parent=11 // pred_fallthru
          _
      $region12: #{tpu_custom_call.1} parent=5 // pred_fallthru
        _
      %p196 = scmp.lt.s32.totalorder %s21, 2
      // Predicated region
      $region21: #{tpu_custom_call.1} parent=5 // pred_check
        %p197 = pneg %p196
      $region22: #{tpu_custom_call.1} parent=5 // pred_check_branch
        %199 = sbr.rel (%p197) target = $region24
      $region23: #{tpu_custom_call.1} parent=5 // pred_region
        // Predicated region
        $region25: #{tpu_custom_call.1} parent=23 // pred_check
          %p200 = pneg %p41
        $region26: #{tpu_custom_call.1} parent=23 // pred_check_branch
          %202 = sbr.rel (%p200) target = $region28
        $region27: #{tpu_custom_call.1} parent=23 // pred_region
          %s203 = sand.u32 %s31, 1
          %s204 = scalar_lea.sflag [#allocation7], %s203
          %s205 = sand.u32 %s31, 1
          %s206 = smul.addr %s205, 64
          %s207 = scalar_lea.vmem [#allocation6], %s206
          %s208 = smul.u32 4, %s21
          %210 = vsyncadd %s204, 0
          %s211 = smul.addr %s208, 4
          %s212 = smul.addr %s211, 4
          %s213 = scalar_lea.hbm %s0, %s212
          %s214 = sshll.u32 %s213, 4
          %s215 = int_to_ptr.hbm [resolvable:$true] %s214
          %s216 = sshll.u32 %s207, 4
          %s217 = int_to_ptr.vmem [resolvable:$true] %s216
          %222 = dma.hbm_to_vmem [thread:$0]  %s215, 1024, %s217, %s204, 256, 256, 16
        $region28: #{tpu_custom_call.1} parent=23 // pred_fallthru
          _
      $region24: #{tpu_custom_call.1} parent=5 // pred_fallthru
        _
      %p223 = scmp.le.s32.totalorder 1, %s21
      %p224 = scmp.lt.s32.totalorder %s21, 3
      %p225 = pnand %p223, %p224
      %p226 = pneg %p225
      // Predicated region
      $region29: #{tpu_custom_call.1} parent=5 // pred_check
        _
      $region30: #{tpu_custom_call.1} parent=5 // pred_check_branch
        %228 = sbr.rel (%p225) target = $region32
      $region31: #{tpu_custom_call.1} parent=5 // pred_region
        %s229 = ssub.s32 %s21, 1
        %s230 = sand.u32 %s34, 1
        %s231 = scalar_lea.sflag [#allocation7], %s230
        %s232 = sand.u32 %s34, 1
        %s233 = smul.addr %s232, 64
        %s234 = scalar_lea.vmem [#allocation6], %s233
        // Predicated region
        $region33: #{tpu_custom_call.1} parent=31 // pred_check
          %p235 = pneg %p47
        $region34: #{tpu_custom_call.1} parent=31 // pred_check_branch
          %237 = sbr.rel (%p235) target = $region36
        $region35: #{tpu_custom_call.1} parent=31 // pred_region
          %239 = dma.done %s231, 1024
        $region36: #{tpu_custom_call.1} parent=31 // pred_fallthru
          _
        // Predicated region
        $region37: #{tpu_custom_call.1} parent=31 // pred_check
          %p240 = pneg %p68
        $region38: #{tpu_custom_call.1} parent=31 // pred_check_branch
          %242 = sbr.rel (%p240) target = $region40
        $region39: #{tpu_custom_call.1} parent=31 // pred_region
          %244 = dma.done [#allocation10], 128
        $region40: #{tpu_custom_call.1} parent=31 // pred_fallthru
          _
        // Predicated region
        $region41: #{tpu_custom_call.1} parent=31 // pred_check
          %p245 = pneg %p89
        $region42: #{tpu_custom_call.1} parent=31 // pred_check_branch
          %247 = sbr.rel (%p245) target = $region44
        $region43: #{tpu_custom_call.1} parent=31 // pred_region
          %249 = dma.done [#allocation10], 128
        $region44: #{tpu_custom_call.1} parent=31 // pred_fallthru
          _
        %s250 = sand.u32 %s34, 1
        %s251 = scalar_lea.sflag [#allocation7], %s250
        %s252 = sand.u32 %s34, 1
        %s253 = smul.addr %s252, 64
        %s254 = scalar_lea.vmem [#allocation6], %s253
        %p255 = pneg %p47
        %p256 = pneg %p44
        %p257 = pneg %p68
        %p258 = pneg %p65
        %p259 = pneg %p89
        %p260 = pneg %p86
        %p261 = pneg %p115
        %p262 = pneg %p112
        %s263 = sand.u32 %s102, 1
        %s264 = scalar_lea.sflag [#allocation8], %s263
        %s265 = sand.u32 %s102, 1
        %s266 = smul.addr %s265, 16
        %s267 = scalar_lea.vmem [#allocation12], %s266
        %p268 = pneg %p136
        %p269 = pneg %p133
        %p270 = pneg %p157
        %p271 = pneg %p154
        %s272 = smul.u32 4, %s26
        %s273 = smul.u32 4, %s26
        %p274 = scmp.eq.s32.totalorder %s26, 0
        // Predicated region
        $region45: #{tpu_custom_call.1} parent=31 // pred_check
          %p275 = pneg %p274
        $region46: #{tpu_custom_call.1} parent=31 // pred_check_branch
          %277 = sbr.rel (%p275) target = $region48
        $region47: #{tpu_custom_call.1} parent=31 // pred_region
          // Predicated region
          $region49: #{tpu_custom_call.1} parent=47 // pred_check
            _
          $region50: #{tpu_custom_call.1} parent=47 // pred_check_branch
            %279 = sbr.rel target = $region52
          $region51: #{tpu_custom_call.1} parent=47 // pred_region
            %280 = sst [smem:[#allocation18]] [#allocation17]
            %281 = sst [smem:[#allocation19]] [#allocation16]
          $region52: #{tpu_custom_call.1} parent=47 // pred_fallthru
            _
          %283 = shalt.err (0)
          %s285 = sshll.u32 %s1, 4
          %s286 = int_to_ptr.hbm [resolvable:$true] %s285
          %s287 = sshll.u32 [#allocation2], 4
          %s288 = int_to_ptr.vmem [resolvable:$true] %s287
          %290 = dma.hbm_to_vmem [thread:$0]  %s286, 4096, %s288, [#allocation5]
          %v291 = vld [vmem:[#allocation9] sm:$0xff]
          %292 = vst [vmem:[#allocation3] sm:$0xff] %v291
          %v293 = vld [vmem:[#allocation11] sm:$0xff]
          %294 = vst [vmem:[#allocation4] sm:$0xff] %v293
          %s295 = smul.u32 4, 16
          %s296 = smul.u32 %s295, 4
          %s297 = sshll.u32 %s296, 4
          %298 = dma.done [#allocation5], %s297
        $region48: #{tpu_custom_call.1} parent=31 // pred_fallthru
          _
        %v299 = vld [vmem:[#allocation3] sm:$0xff]
        %v300 = vld [vmem:[#allocation4] sm:$0xff]
        %v301 = vpack.c.bf16 %v299, %v299
        %v302 = vld [vmem:[#allocation2] sm:$0xff]
        %v303 = vld [vmem:[#allocation2 + $0x8] sm:$0xff]
        %v304 = vld [vmem:[#allocation2 + $0x10] sm:$0xff]
        %v305 = vld [vmem:[#allocation2 + $0x18] sm:$0xff]
        %v306 = vld [vmem:[#allocation2 + $0x20] sm:$0xff]
        %v307 = vld [vmem:[#allocation2 + $0x28] sm:$0xff]
        %v308 = vld [vmem:[#allocation2 + $0x30] sm:$0xff]
        %v309 = vld [vmem:[#allocation2 + $0x38] sm:$0xff]
        %v310 = vld [vmem:[#allocation2 + $0x40] sm:$0xff]
        %v311 = vld [vmem:[#allocation2 + $0x48] sm:$0xff]
        %v312 = vld [vmem:[#allocation2 + $0x50] sm:$0xff]
        %v313 = vld [vmem:[#allocation2 + $0x58] sm:$0xff]
        %v314 = vld [vmem:[#allocation2 + $0x60] sm:$0xff]
        %v315 = vld [vmem:[#allocation2 + $0x68] sm:$0xff]
        %v316 = vld [vmem:[#allocation2 + $0x70] sm:$0xff]
        %v317 = vld [vmem:[#allocation2 + $0x78] sm:$0xff]
        %v318 = vld [vmem:[#allocation2 + $0x80] sm:$0xff]
        %v319 = vld [vmem:[#allocation2 + $0x88] sm:$0xff]
        %v320 = vld [vmem:[#allocation2 + $0x90] sm:$0xff]
        %v321 = vld [vmem:[#allocation2 + $0x98] sm:$0xff]
        %v322 = vld [vmem:[#allocation2 + $0xa0] sm:$0xff]
        %v323 = vld [vmem:[#allocation2 + $0xa8] sm:$0xff]
        %v324 = vld [vmem:[#allocation2 + $0xb0] sm:$0xff]
        %v325 = vld [vmem:[#allocation2 + $0xb8] sm:$0xff]
        %v326 = vld [vmem:[#allocation2 + $0xc0] sm:$0xff]
        %v327 = vld [vmem:[#allocation2 + $0xc8] sm:$0xff]
        %v328 = vld [vmem:[#allocation2 + $0xd0] sm:$0xff]
        %v329 = vld [vmem:[#allocation2 + $0xd8] sm:$0xff]
        %v330 = vld [vmem:[#allocation2 + $0xe0] sm:$0xff]
        %v331 = vld [vmem:[#allocation2 + $0xe8] sm:$0xff]
        %v332 = vld [vmem:[#allocation2 + $0xf0] sm:$0xff]
        %v333 = vld [vmem:[#allocation2 + $0xf8] sm:$0xff]
        %v334 = vld [vmem:[%s234] sm:$0xff]
        %v335 = vld [vmem:[%s234 + $0x8] sm:$0xff]
        %v336 = vunpack.c.l.bf16 %v334
        %v337 = vunpack.c.h.bf16 %v334
        %v338 = vunpack.c.l.bf16 %v335
        %v339 = vunpack.c.h.bf16 %v335
        %v372 = vunpack.c.l.b16 %v302
        %v373 = vunpack.c.h.b16 %v302
        %v374 = vunpack.c.l.b16 %v303
        %v375 = vunpack.c.h.b16 %v303
        %v376 = vunpack.c.l.b16 %v304
        %v377 = vunpack.c.h.b16 %v304
        %v378 = vunpack.c.l.b16 %v305
        %v379 = vunpack.c.h.b16 %v305
        %v380 = vunpack.c.l.b16 %v306
        %v381 = vunpack.c.h.b16 %v306
        %v382 = vunpack.c.l.b16 %v307
        %v383 = vunpack.c.h.b16 %v307
        %v384 = vunpack.c.l.b16 %v308
        %v385 = vunpack.c.h.b16 %v308
        %v386 = vunpack.c.l.b16 %v309
        %v387 = vunpack.c.h.b16 %v309
        %v388 = vunpack.c.l.b16 %v310
        %v389 = vunpack.c.h.b16 %v310
        %v390 = vunpack.c.l.b16 %v311
        %v391 = vunpack.c.h.b16 %v311
        %v392 = vunpack.c.l.b16 %v312
        %v393 = vunpack.c.h.b16 %v312
        %v394 = vunpack.c.l.b16 %v313
        %v395 = vunpack.c.h.b16 %v313
        %v396 = vunpack.c.l.b16 %v314
        %v397 = vunpack.c.h.b16 %v314
        %v398 = vunpack.c.l.b16 %v315
        %v399 = vunpack.c.h.b16 %v315
        %v400 = vunpack.c.l.b16 %v316
        %v401 = vunpack.c.h.b16 %v316
        %v402 = vunpack.c.l.b16 %v317
        %v403 = vunpack.c.h.b16 %v317
        %v404 = vunpack.c.l.b16 %v318
        %v405 = vunpack.c.h.b16 %v318
        %v406 = vunpack.c.l.b16 %v319
        %v407 = vunpack.c.h.b16 %v319
        %v408 = vunpack.c.l.b16 %v320
        %v409 = vunpack.c.h.b16 %v320
        %v410 = vunpack.c.l.b16 %v321
        %v411 = vunpack.c.h.b16 %v321
        %v412 = vunpack.c.l.b16 %v322
        %v413 = vunpack.c.h.b16 %v322
        %v414 = vunpack.c.l.b16 %v323
        %v415 = vunpack.c.h.b16 %v323
        %v416 = vunpack.c.l.b16 %v324
        %v417 = vunpack.c.h.b16 %v324
        %v418 = vunpack.c.l.b16 %v325
        %v419 = vunpack.c.h.b16 %v325
        %v420 = vunpack.c.l.b16 %v326
        %v421 = vunpack.c.h.b16 %v326
        %v422 = vunpack.c.l.b16 %v327
        %v423 = vunpack.c.h.b16 %v327
        %v424 = vunpack.c.l.b16 %v328
        %v425 = vunpack.c.h.b16 %v328
        %v426 = vunpack.c.l.b16 %v329
        %v427 = vunpack.c.h.b16 %v329
        %v428 = vunpack.c.l.b16 %v330
        %v429 = vunpack.c.h.b16 %v330
        %v430 = vunpack.c.l.b16 %v331
        %v431 = vunpack.c.h.b16 %v331
        %v432 = vunpack.c.l.b16 %v332
        %v433 = vunpack.c.h.b16 %v332
        %v434 = vunpack.c.l.b16 %v333
        %v435 = vunpack.c.h.b16 %v333
        %v436 = vpack.c.b16 %v376, %v372
        %v437 = vpack.c.b16 %v377, %v373
        %v438 = vpack.c.b16 %v378, %v374
        %v439 = vpack.c.b16 %v379, %v375
        %v440 = vpack.c.b16 %v384, %v380
        %v441 = vpack.c.b16 %v385, %v381
        %v442 = vpack.c.b16 %v386, %v382
        %v443 = vpack.c.b16 %v387, %v383
        %v444 = vpack.c.b16 %v392, %v388
        %v445 = vpack.c.b16 %v393, %v389
        %v446 = vpack.c.b16 %v394, %v390
        %v447 = vpack.c.b16 %v395, %v391
        %v448 = vpack.c.b16 %v400, %v396
        %v449 = vpack.c.b16 %v401, %v397
        %v450 = vpack.c.b16 %v402, %v398
        %v451 = vpack.c.b16 %v403, %v399
        %v452 = vpack.c.b16 %v408, %v404
        %v453 = vpack.c.b16 %v409, %v405
        %v454 = vpack.c.b16 %v410, %v406
        %v455 = vpack.c.b16 %v411, %v407
        %v456 = vpack.c.b16 %v416, %v412
        %v457 = vpack.c.b16 %v417, %v413
        %v458 = vpack.c.b16 %v418, %v414
        %v459 = vpack.c.b16 %v419, %v415
        %v460 = vpack.c.b16 %v424, %v420
        %v461 = vpack.c.b16 %v425, %v421
        %v462 = vpack.c.b16 %v426, %v422
        %v463 = vpack.c.b16 %v427, %v423
        %v464 = vpack.c.b16 %v432, %v428
        %v465 = vpack.c.b16 %v433, %v429
        %v466 = vpack.c.b16 %v434, %v430
        %v467 = vpack.c.b16 %v435, %v431
        %500 = vmatpush.bf16.msra.mxu0 %v464
        %501 = vmatpush.bf16.msra.mxu0 %v460
        %502 = vmatpush.bf16.msra.mxu0 %v456
        %503 = vmatpush.bf16.msra.mxu0 %v452
        %504 = vmatpush.bf16.msra.mxu0 %v448
        %505 = vmatpush.bf16.msra.mxu0 %v444
        %506 = vmatpush.bf16.msra.mxu0 %v440
        %507 = vmatpush.bf16.msra.mxu0 %v436
        %508 = vmatmul.bf16.gmra.mxu0 %v301
        %v509 = vpop.f32.mrf.mxu0
        %v510 = vadd.f32 %v336, %v509
        %v511 = vpop.f32.mrf.mxu0
        %512 = vdwg.mxu0
        %513 = vmatpush.bf16.msra.mxu0 %v465
        %514 = vmatpush.bf16.msra.mxu0 %v461
        %515 = vmatpush.bf16.msra.mxu0 %v457
        %516 = vmatpush.bf16.msra.mxu0 %v453
        %517 = vmatpush.bf16.msra.mxu0 %v449
        %518 = vmatpush.bf16.msra.mxu0 %v445
        %519 = vmatpush.bf16.msra.mxu0 %v441
        %520 = vmatpush.bf16.msra.mxu0 %v437
        %521 = vmatmul.bf16.gmra.mxu0 %v301
        %v522 = vpop.f32.mrf.mxu0
        %v523 = vadd.f32 %v337, %v522
        %v524 = vpop.f32.mrf.mxu0
        %525 = vdwg.mxu0
        %526 = vmatpush.bf16.msra.mxu0 %v466
        %527 = vmatpush.bf16.msra.mxu0 %v462
        %528 = vmatpush.bf16.msra.mxu0 %v458
        %529 = vmatpush.bf16.msra.mxu0 %v454
        %530 = vmatpush.bf16.msra.mxu0 %v450
        %531 = vmatpush.bf16.msra.mxu0 %v446
        %532 = vmatpush.bf16.msra.mxu0 %v442
        %533 = vmatpush.bf16.msra.mxu0 %v438
        %534 = vmatmul.bf16.gmra.mxu0 %v301
        %v535 = vpop.f32.mrf.mxu0
        %v536 = vadd.f32 %v338, %v535
        %v537 = vpop.f32.mrf.mxu0
        %538 = vdwg.mxu0
        %539 = vmatpush.bf16.msra.mxu0 %v467
        %540 = vmatpush.bf16.msra.mxu0 %v463
        %541 = vmatpush.bf16.msra.mxu0 %v459
        %542 = vmatpush.bf16.msra.mxu0 %v455
        %543 = vmatpush.bf16.msra.mxu0 %v451
        %544 = vmatpush.bf16.msra.mxu0 %v447
        %545 = vmatpush.bf16.msra.mxu0 %v443
        %546 = vmatpush.bf16.msra.mxu0 %v439
        %547 = vmatmul.bf16.gmra.mxu0 %v301
        %v548 = vpop.f32.mrf.mxu0
        %v549 = vadd.f32 %v339, %v548
        %v550 = vpop.f32.mrf.mxu0
        %551 = vdwg.mxu0
        %v552 = vxor.u32 %v510, 2147483648
        %v553 = vmul.f32 %v552, 1.442695
        %v554 = vpow.pop %v553
        %v555 = vadd.f32 %v554, 1.0
        %v556 = vrcp.pop %v555
        %v557 = vmul.f32 %v555, %v556
        %v558 = vsub.f32 1.0, %v557
        %v559 = vmul.f32 %v556, %v558
        %v560 = vadd.f32 %v556, %v559
        %vm561 = vweird.f32 %v555
        %vm562 = vweird.f32 %v556
        %vm563 = vmor %vm561, %vm562
        %v564 = vsel %vm563, %v556, %v560
        %v565 = vand.u32 2147483647, %v555
        %vm566 = vcmp.eq.f32.partialorder %v565, 8.507059e+37
        %v567 = vand.u32 %v555, 2147483648
        %v568 = vor.u32 1.1754944e-38, %v567
        %v569 = vsel %vm566, %v568, %v564
        %v570 = vmul.f32 1.0, %v569
        %v571 = vxor.u32 %v523, 2147483648
        %v572 = vmul.f32 %v571, 1.442695
        %v573 = vpow.pop %v572
        %v574 = vadd.f32 %v573, 1.0
        %v575 = vrcp.pop %v574
        %v576 = vmul.f32 %v574, %v575
        %v577 = vsub.f32 1.0, %v576
        %v578 = vmul.f32 %v575, %v577
        %v579 = vadd.f32 %v575, %v578
        %vm580 = vweird.f32 %v574
        %vm581 = vweird.f32 %v575
        %vm582 = vmor %vm580, %vm581
        %v583 = vsel %vm582, %v575, %v579
        %v584 = vand.u32 2147483647, %v574
        %vm585 = vcmp.eq.f32.partialorder %v584, 8.507059e+37
        %v586 = vand.u32 %v574, 2147483648
        %v587 = vor.u32 1.1754944e-38, %v586
        %v588 = vsel %vm585, %v587, %v583
        %v589 = vmul.f32 1.0, %v588
        %v590 = vtanh.pop %v536
        %v591 = vxor.u32 %v549, 2147483648
        %v592 = vmul.f32 %v591, 1.442695
        %v593 = vpow.pop %v592
        %v594 = vadd.f32 %v593, 1.0
        %v595 = vrcp.pop %v594
        %v596 = vmul.f32 %v594, %v595
        %v597 = vsub.f32 1.0, %v596
        %v598 = vmul.f32 %v595, %v597
        %v599 = vadd.f32 %v595, %v598
        %vm600 = vweird.f32 %v594
        %vm601 = vweird.f32 %v595
        %vm602 = vmor %vm600, %vm601
        %v603 = vsel %vm602, %v595, %v599
        %v604 = vand.u32 2147483647, %v594
        %vm605 = vcmp.eq.f32.partialorder %v604, 8.507059e+37
        %v606 = vand.u32 %v594, 2147483648
        %v607 = vor.u32 1.1754944e-38, %v606
        %v608 = vsel %vm605, %v607, %v603
        %v609 = vmul.f32 1.0, %v608
        %v610 = vmul.f32 %v589, %v300
        %v611 = vmul.f32 %v570, %v590
        %v612 = vadd.f32 %v610, %v611
        %v613 = vtanh.pop %v612
        %v614 = vmul.f32 %v609, %v613
        %v615 = vpack.c.bf16 %v614, %v614
        %616 = vst [vmem:[%s267] sm:$0xf] %v615
        %v617 = vld [vmem:[#allocation2] sm:$0xff]
        %v618 = vld [vmem:[#allocation2 + $0x8] sm:$0xff]
        %v619 = vld [vmem:[#allocation2 + $0x10] sm:$0xff]
        %v620 = vld [vmem:[#allocation2 + $0x18] sm:$0xff]
        %v621 = vld [vmem:[#allocation2 + $0x20] sm:$0xff]
        %v622 = vld [vmem:[#allocation2 + $0x28] sm:$0xff]
        %v623 = vld [vmem:[#allocation2 + $0x30] sm:$0xff]
        %v624 = vld [vmem:[#allocation2 + $0x38] sm:$0xff]
        %v625 = vld [vmem:[#allocation2 + $0x40] sm:$0xff]
        %v626 = vld [vmem:[#allocation2 + $0x48] sm:$0xff]
        %v627 = vld [vmem:[#allocation2 + $0x50] sm:$0xff]
        %v628 = vld [vmem:[#allocation2 + $0x58] sm:$0xff]
        %v629 = vld [vmem:[#allocation2 + $0x60] sm:$0xff]
        %v630 = vld [vmem:[#allocation2 + $0x68] sm:$0xff]
        %v631 = vld [vmem:[#allocation2 + $0x70] sm:$0xff]
        %v632 = vld [vmem:[#allocation2 + $0x78] sm:$0xff]
        %v633 = vld [vmem:[#allocation2 + $0x80] sm:$0xff]
        %v634 = vld [vmem:[#allocation2 + $0x88] sm:$0xff]
        %v635 = vld [vmem:[#allocation2 + $0x90] sm:$0xff]
        %v636 = vld [vmem:[#allocation2 + $0x98] sm:$0xff]
        %v637 = vld [vmem:[#allocation2 + $0xa0] sm:$0xff]
        %v638 = vld [vmem:[#allocation2 + $0xa8] sm:$0xff]
        %v639 = vld [vmem:[#allocation2 + $0xb0] sm:$0xff]
        %v640 = vld [vmem:[#allocation2 + $0xb8] sm:$0xff]
        %v641 = vld [vmem:[#allocation2 + $0xc0] sm:$0xff]
        %v642 = vld [vmem:[#allocation2 + $0xc8] sm:$0xff]
        %v643 = vld [vmem:[#allocation2 + $0xd0] sm:$0xff]
        %v644 = vld [vmem:[#allocation2 + $0xd8] sm:$0xff]
        %v645 = vld [vmem:[#allocation2 + $0xe0] sm:$0xff]
        %v646 = vld [vmem:[#allocation2 + $0xe8] sm:$0xff]
        %v647 = vld [vmem:[#allocation2 + $0xf0] sm:$0xff]
        %v648 = vld [vmem:[#allocation2 + $0xf8] sm:$0xff]
        %s649 = scalar_lea.vmem %s234, 16 [#allocation6]
        %v650 = vld [vmem:[%s649] sm:$0xff]
        %v651 = vld [vmem:[%s649 + $0x8] sm:$0xff]
        %v652 = vunpack.c.l.bf16 %v650
        %v653 = vunpack.c.h.bf16 %v650
        %v654 = vunpack.c.l.bf16 %v651
        %v655 = vunpack.c.h.bf16 %v651
        %v688 = vunpack.c.l.b16 %v617
        %v689 = vunpack.c.h.b16 %v617
        %v690 = vunpack.c.l.b16 %v618
        %v691 = vunpack.c.h.b16 %v618
        %v692 = vunpack.c.l.b16 %v619
        %v693 = vunpack.c.h.b16 %v619
        %v694 = vunpack.c.l.b16 %v620
        %v695 = vunpack.c.h.b16 %v620
        %v696 = vunpack.c.l.b16 %v621
        %v697 = vunpack.c.h.b16 %v621
        %v698 = vunpack.c.l.b16 %v622
        %v699 = vunpack.c.h.b16 %v622
        %v700 = vunpack.c.l.b16 %v623
        %v701 = vunpack.c.h.b16 %v623
        %v702 = vunpack.c.l.b16 %v624
        %v703 = vunpack.c.h.b16 %v624
        %v704 = vunpack.c.l.b16 %v625
        %v705 = vunpack.c.h.b16 %v625
        %v706 = vunpack.c.l.b16 %v626
        %v707 = vunpack.c.h.b16 %v626
        %v708 = vunpack.c.l.b16 %v627
        %v709 = vunpack.c.h.b16 %v627
        %v710 = vunpack.c.l.b16 %v628
        %v711 = vunpack.c.h.b16 %v628
        %v712 = vunpack.c.l.b16 %v629
        %v713 = vunpack.c.h.b16 %v629
        %v714 = vunpack.c.l.b16 %v630
        %v715 = vunpack.c.h.b16 %v630
        %v716 = vunpack.c.l.b16 %v631
        %v717 = vunpack.c.h.b16 %v631
        %v718 = vunpack.c.l.b16 %v632
        %v719 = vunpack.c.h.b16 %v632
        %v720 = vunpack.c.l.b16 %v633
        %v721 = vunpack.c.h.b16 %v633
        %v722 = vunpack.c.l.b16 %v634
        %v723 = vunpack.c.h.b16 %v634
        %v724 = vunpack.c.l.b16 %v635
        %v725 = vunpack.c.h.b16 %v635
        %v726 = vunpack.c.l.b16 %v636
        %v727 = vunpack.c.h.b16 %v636
        %v728 = vunpack.c.l.b16 %v637
        %v729 = vunpack.c.h.b16 %v637
        %v730 = vunpack.c.l.b16 %v638
        %v731 = vunpack.c.h.b16 %v638
        %v732 = vunpack.c.l.b16 %v639
        %v733 = vunpack.c.h.b16 %v639
        %v734 = vunpack.c.l.b16 %v640
        %v735 = vunpack.c.h.b16 %v640
        %v736 = vunpack.c.l.b16 %v641
        %v737 = vunpack.c.h.b16 %v641
        %v738 = vunpack.c.l.b16 %v642
        %v739 = vunpack.c.h.b16 %v642
        %v740 = vunpack.c.l.b16 %v643
        %v741 = vunpack.c.h.b16 %v643
        %v742 = vunpack.c.l.b16 %v644
        %v743 = vunpack.c.h.b16 %v644
        %v744 = vunpack.c.l.b16 %v645
        %v745 = vunpack.c.h.b16 %v645
        %v746 = vunpack.c.l.b16 %v646
        %v747 = vunpack.c.h.b16 %v646
        %v748 = vunpack.c.l.b16 %v647
        %v749 = vunpack.c.h.b16 %v647
        %v750 = vunpack.c.l.b16 %v648
        %v751 = vunpack.c.h.b16 %v648
        %v752 = vpack.c.b16 %v692, %v688
        %v753 = vpack.c.b16 %v693, %v689
        %v754 = vpack.c.b16 %v694, %v690
        %v755 = vpack.c.b16 %v695, %v691
        %v756 = vpack.c.b16 %v700, %v696
        %v757 = vpack.c.b16 %v701, %v697
        %v758 = vpack.c.b16 %v702, %v698
        %v759 = vpack.c.b16 %v703, %v699
        %v760 = vpack.c.b16 %v708, %v704
        %v761 = vpack.c.b16 %v709, %v705
        %v762 = vpack.c.b16 %v710, %v706
        %v763 = vpack.c.b16 %v711, %v707
        %v764 = vpack.c.b16 %v716, %v712
        %v765 = vpack.c.b16 %v717, %v713
        %v766 = vpack.c.b16 %v718, %v714
        %v767 = vpack.c.b16 %v719, %v715
        %v768 = vpack.c.b16 %v724, %v720
        %v769 = vpack.c.b16 %v725, %v721
        %v770 = vpack.c.b16 %v726, %v722
        %v771 = vpack.c.b16 %v727, %v723
        %v772 = vpack.c.b16 %v732, %v728
        %v773 = vpack.c.b16 %v733, %v729
        %v774 = vpack.c.b16 %v734, %v730
        %v775 = vpack.c.b16 %v735, %v731
        %v776 = vpack.c.b16 %v740, %v736
        %v777 = vpack.c.b16 %v741, %v737
        %v778 = vpack.c.b16 %v742, %v738
        %v779 = vpack.c.b16 %v743, %v739
        %v780 = vpack.c.b16 %v748, %v744
        %v781 = vpack.c.b16 %v749, %v745
        %v782 = vpack.c.b16 %v750, %v746
        %v783 = vpack.c.b16 %v751, %v747
        %816 = vmatpush.bf16.msra.mxu0 %v780
        %817 = vmatpush.bf16.msra.mxu0 %v776
        %818 = vmatpush.bf16.msra.mxu0 %v772
        %819 = vmatpush.bf16.msra.mxu0 %v768
        %820 = vmatpush.bf16.msra.mxu0 %v764
        %821 = vmatpush.bf16.msra.mxu0 %v760
        %822 = vmatpush.bf16.msra.mxu0 %v756
        %823 = vmatpush.bf16.msra.mxu0 %v752
        %824 = vmatmul.bf16.gmra.mxu0 %v615
        %v825 = vpop.f32.mrf.mxu0
        %v826 = vadd.f32 %v652, %v825
        %v827 = vpop.f32.mrf.mxu0
        %828 = vdwg.mxu0
        %829 = vmatpush.bf16.msra.mxu0 %v781
        %830 = vmatpush.bf16.msra.mxu0 %v777
        %831 = vmatpush.bf16.msra.mxu0 %v773
        %832 = vmatpush.bf16.msra.mxu0 %v769
        %833 = vmatpush.bf16.msra.mxu0 %v765
        %834 = vmatpush.bf16.msra.mxu0 %v761
        %835 = vmatpush.bf16.msra.mxu0 %v757
        %836 = vmatpush.bf16.msra.mxu0 %v753
        %837 = vmatmul.bf16.gmra.mxu0 %v615
        %v838 = vpop.f32.mrf.mxu0
        %v839 = vadd.f32 %v653, %v838
        %v840 = vpop.f32.mrf.mxu0
        %841 = vdwg.mxu0
        %842 = vmatpush.bf16.msra.mxu0 %v782
        %843 = vmatpush.bf16.msra.mxu0 %v778
        %844 = vmatpush.bf16.msra.mxu0 %v774
        %845 = vmatpush.bf16.msra.mxu0 %v770
        %846 = vmatpush.bf16.msra.mxu0 %v766
        %847 = vmatpush.bf16.msra.mxu0 %v762
        %848 = vmatpush.bf16.msra.mxu0 %v758
        %849 = vmatpush.bf16.msra.mxu0 %v754
        %850 = vmatmul.bf16.gmra.mxu0 %v615
        %v851 = vpop.f32.mrf.mxu0
        %v852 = vadd.f32 %v654, %v851
        %v853 = vpop.f32.mrf.mxu0
        %854 = vdwg.mxu0
        %855 = vmatpush.bf16.msra.mxu0 %v783
        %856 = vmatpush.bf16.msra.mxu0 %v779
        %857 = vmatpush.bf16.msra.mxu0 %v775
        %858 = vmatpush.bf16.msra.mxu0 %v771
        %859 = vmatpush.bf16.msra.mxu0 %v767
        %860 = vmatpush.bf16.msra.mxu0 %v763
        %861 = vmatpush.bf16.msra.mxu0 %v759
        %862 = vmatpush.bf16.msra.mxu0 %v755
        %863 = vmatmul.bf16.gmra.mxu0 %v615
        %v864 = vpop.f32.mrf.mxu0
        %v865 = vadd.f32 %v655, %v864
        %v866 = vpop.f32.mrf.mxu0
        %867 = vdwg.mxu0
        %v868 = vxor.u32 %v826, 2147483648
        %v869 = vmul.f32 %v868, 1.442695
        %v870 = vpow.pop %v869
        %v871 = vadd.f32 %v870, 1.0
        %v872 = vrcp.pop %v871
        %v873 = vmul.f32 %v871, %v872
        %v874 = vsub.f32 1.0, %v873
        %v875 = vmul.f32 %v872, %v874
        %v876 = vadd.f32 %v872, %v875
        %vm877 = vweird.f32 %v871
        %vm878 = vweird.f32 %v872
        %vm879 = vmor %vm877, %vm878
        %v880 = vsel %vm879, %v872, %v876
        %v881 = vand.u32 2147483647, %v871
        %vm882 = vcmp.eq.f32.partialorder %v881, 8.507059e+37
        %v883 = vand.u32 %v871, 2147483648
        %v884 = vor.u32 1.1754944e-38, %v883
        %v885 = vsel %vm882, %v884, %v880
        %v886 = vmul.f32 1.0, %v885
        %v887 = vxor.u32 %v839, 2147483648
        %v888 = vmul.f32 %v887, 1.442695
        %v889 = vpow.pop %v888
        %v890 = vadd.f32 %v889, 1.0
        %v891 = vrcp.pop %v890
        %v892 = vmul.f32 %v890, %v891
        %v893 = vsub.f32 1.0, %v892
        %v894 = vmul.f32 %v891, %v893
        %v895 = vadd.f32 %v891, %v894
        %vm896 = vweird.f32 %v890
        %vm897 = vweird.f32 %v891
        %vm898 = vmor %vm896, %vm897
        %v899 = vsel %vm898, %v891, %v895
        %v900 = vand.u32 2147483647, %v890
        %vm901 = vcmp.eq.f32.partialorder %v900, 8.507059e+37
        %v902 = vand.u32 %v890, 2147483648
        %v903 = vor.u32 1.1754944e-38, %v902
        %v904 = vsel %vm901, %v903, %v899
        %v905 = vmul.f32 1.0, %v904
        %v906 = vtanh.pop %v852
        %v907 = vxor.u32 %v865, 2147483648
        %v908 = vmul.f32 %v907, 1.442695
        %v909 = vpow.pop %v908
        %v910 = vadd.f32 %v909, 1.0
        %v911 = vrcp.pop %v910
        %v912 = vmul.f32 %v910, %v911
        %v913 = vsub.f32 1.0, %v912
        %v914 = vmul.f32 %v911, %v913
        %v915 = vadd.f32 %v911, %v914
        %vm916 = vweird.f32 %v910
        %vm917 = vweird.f32 %v911
        %vm918 = vmor %vm916, %vm917
        %v919 = vsel %vm918, %v911, %v915
        %v920 = vand.u32 2147483647, %v910
        %vm921 = vcmp.eq.f32.partialorder %v920, 8.507059e+37
        %v922 = vand.u32 %v910, 2147483648
        %v923 = vor.u32 1.1754944e-38, %v922
        %v924 = vsel %vm921, %v923, %v919
        %v925 = vmul.f32 1.0, %v924
        %v926 = vmul.f32 %v905, %v612
        %v927 = vmul.f32 %v886, %v906
        %v928 = vadd.f32 %v926, %v927
        %v929 = vtanh.pop %v928
        %v930 = vmul.f32 %v925, %v929
        %v931 = vpack.c.bf16 %v930, %v930
        %s932 = scalar_lea.vmem %s267, 4 [#allocation12]
        %933 = vst [vmem:[%s932] sm:$0xf] %v931
        %v934 = vld [vmem:[#allocation2] sm:$0xff]
        %v935 = vld [vmem:[#allocation2 + $0x8] sm:$0xff]
        %v936 = vld [vmem:[#allocation2 + $0x10] sm:$0xff]
        %v937 = vld [vmem:[#allocation2 + $0x18] sm:$0xff]
        %v938 = vld [vmem:[#allocation2 + $0x20] sm:$0xff]
        %v939 = vld [vmem:[#allocation2 + $0x28] sm:$0xff]
        %v940 = vld [vmem:[#allocation2 + $0x30] sm:$0xff]
        %v941 = vld [vmem:[#allocation2 + $0x38] sm:$0xff]
        %v942 = vld [vmem:[#allocation2 + $0x40] sm:$0xff]
        %v943 = vld [vmem:[#allocation2 + $0x48] sm:$0xff]
        %v944 = vld [vmem:[#allocation2 + $0x50] sm:$0xff]
        %v945 = vld [vmem:[#allocation2 + $0x58] sm:$0xff]
        %v946 = vld [vmem:[#allocation2 + $0x60] sm:$0xff]
        %v947 = vld [vmem:[#allocation2 + $0x68] sm:$0xff]
        %v948 = vld [vmem:[#allocation2 + $0x70] sm:$0xff]
        %v949 = vld [vmem:[#allocation2 + $0x78] sm:$0xff]
        %v950 = vld [vmem:[#allocation2 + $0x80] sm:$0xff]
        %v951 = vld [vmem:[#allocation2 + $0x88] sm:$0xff]
        %v952 = vld [vmem:[#allocation2 + $0x90] sm:$0xff]
        %v953 = vld [vmem:[#allocation2 + $0x98] sm:$0xff]
        %v954 = vld [vmem:[#allocation2 + $0xa0] sm:$0xff]
        %v955 = vld [vmem:[#allocation2 + $0xa8] sm:$0xff]
        %v956 = vld [vmem:[#allocation2 + $0xb0] sm:$0xff]
        %v957 = vld [vmem:[#allocation2 + $0xb8] sm:$0xff]
        %v958 = vld [vmem:[#allocation2 + $0xc0] sm:$0xff]
        %v959 = vld [vmem:[#allocation2 + $0xc8] sm:$0xff]
        %v960 = vld [vmem:[#allocation2 + $0xd0] sm:$0xff]
        %v961 = vld [vmem:[#allocation2 + $0xd8] sm:$0xff]
        %v962 = vld [vmem:[#allocation2 + $0xe0] sm:$0xff]
        %v963 = vld [vmem:[#allocation2 + $0xe8] sm:$0xff]
        %v964 = vld [vmem:[#allocation2 + $0xf0] sm:$0xff]
        %v965 = vld [vmem:[#allocation2 + $0xf8] sm:$0xff]
        %s966 = scalar_lea.vmem %s234, 32 [#allocation6]
        %v967 = vld [vmem:[%s966] sm:$0xff]
        %v968 = vld [vmem:[%s966 + $0x8] sm:$0xff]
        %v969 = vunpack.c.l.bf16 %v967
        %v970 = vunpack.c.h.bf16 %v967
        %v971 = vunpack.c.l.bf16 %v968
        %v972 = vunpack.c.h.bf16 %v968
        %v1005 = vunpack.c.l.b16 %v934
        %v1006 = vunpack.c.h.b16 %v934
        %v1007 = vunpack.c.l.b16 %v935
        %v1008 = vunpack.c.h.b16 %v935
        %v1009 = vunpack.c.l.b16 %v936
        %v1010 = vunpack.c.h.b16 %v936
        %v1011 = vunpack.c.l.b16 %v937
        %v1012 = vunpack.c.h.b16 %v937
        %v1013 = vunpack.c.l.b16 %v938
        %v1014 = vunpack.c.h.b16 %v938
        %v1015 = vunpack.c.l.b16 %v939
        %v1016 = vunpack.c.h.b16 %v939
        %v1017 = vunpack.c.l.b16 %v940
        %v1018 = vunpack.c.h.b16 %v940
        %v1019 = vunpack.c.l.b16 %v941
        %v1020 = vunpack.c.h.b16 %v941
        %v1021 = vunpack.c.l.b16 %v942
        %v1022 = vunpack.c.h.b16 %v942
        %v1023 = vunpack.c.l.b16 %v943
        %v1024 = vunpack.c.h.b16 %v943
        %v1025 = vunpack.c.l.b16 %v944
        %v1026 = vunpack.c.h.b16 %v944
        %v1027 = vunpack.c.l.b16 %v945
        %v1028 = vunpack.c.h.b16 %v945
        %v1029 = vunpack.c.l.b16 %v946
        %v1030 = vunpack.c.h.b16 %v946
        %v1031 = vunpack.c.l.b16 %v947
        %v1032 = vunpack.c.h.b16 %v947
        %v1033 = vunpack.c.l.b16 %v948
        %v1034 = vunpack.c.h.b16 %v948
        %v1035 = vunpack.c.l.b16 %v949
        %v1036 = vunpack.c.h.b16 %v949
        %v1037 = vunpack.c.l.b16 %v950
        %v1038 = vunpack.c.h.b16 %v950
        %v1039 = vunpack.c.l.b16 %v951
        %v1040 = vunpack.c.h.b16 %v951
        %v1041 = vunpack.c.l.b16 %v952
        %v1042 = vunpack.c.h.b16 %v952
        %v1043 = vunpack.c.l.b16 %v953
        %v1044 = vunpack.c.h.b16 %v953
        %v1045 = vunpack.c.l.b16 %v954
        %v1046 = vunpack.c.h.b16 %v954
        %v1047 = vunpack.c.l.b16 %v955
        %v1048 = vunpack.c.h.b16 %v955
        %v1049 = vunpack.c.l.b16 %v956
        %v1050 = vunpack.c.h.b16 %v956
        %v1051 = vunpack.c.l.b16 %v957
        %v1052 = vunpack.c.h.b16 %v957
        %v1053 = vunpack.c.l.b16 %v958
        %v1054 = vunpack.c.h.b16 %v958
        %v1055 = vunpack.c.l.b16 %v959
        %v1056 = vunpack.c.h.b16 %v959
        %v1057 = vunpack.c.l.b16 %v960
        %v1058 = vunpack.c.h.b16 %v960
        %v1059 = vunpack.c.l.b16 %v961
        %v1060 = vunpack.c.h.b16 %v961
        %v1061 = vunpack.c.l.b16 %v962
        %v1062 = vunpack.c.h.b16 %v962
        %v1063 = vunpack.c.l.b16 %v963
        %v1064 = vunpack.c.h.b16 %v963
        %v1065 = vunpack.c.l.b16 %v964
        %v1066 = vunpack.c.h.b16 %v964
        %v1067 = vunpack.c.l.b16 %v965
        %v1068 = vunpack.c.h.b16 %v965
        %v1069 = vpack.c.b16 %v1009, %v1005
        %v1070 = vpack.c.b16 %v1010, %v1006
        %v1071 = vpack.c.b16 %v1011, %v1007
        %v1072 = vpack.c.b16 %v1012, %v1008
        %v1073 = vpack.c.b16 %v1017, %v1013
        %v1074 = vpack.c.b16 %v1018, %v1014
        %v1075 = vpack.c.b16 %v1019, %v1015
        %v1076 = vpack.c.b16 %v1020, %v1016
        %v1077 = vpack.c.b16 %v1025, %v1021
        %v1078 = vpack.c.b16 %v1026, %v1022
        %v1079 = vpack.c.b16 %v1027, %v1023
        %v1080 = vpack.c.b16 %v1028, %v1024
        %v1081 = vpack.c.b16 %v1033, %v1029
        %v1082 = vpack.c.b16 %v1034, %v1030
        %v1083 = vpack.c.b16 %v1035, %v1031
        %v1084 = vpack.c.b16 %v1036, %v1032
        %v1085 = vpack.c.b16 %v1041, %v1037
        %v1086 = vpack.c.b16 %v1042, %v1038
        %v1087 = vpack.c.b16 %v1043, %v1039
        %v1088 = vpack.c.b16 %v1044, %v1040
        %v1089 = vpack.c.b16 %v1049, %v1045
        %v1090 = vpack.c.b16 %v1050, %v1046
        %v1091 = vpack.c.b16 %v1051, %v1047
        %v1092 = vpack.c.b16 %v1052, %v1048
        %v1093 = vpack.c.b16 %v1057, %v1053
        %v1094 = vpack.c.b16 %v1058, %v1054
        %v1095 = vpack.c.b16 %v1059, %v1055
        %v1096 = vpack.c.b16 %v1060, %v1056
        %v1097 = vpack.c.b16 %v1065, %v1061
        %v1098 = vpack.c.b16 %v1066, %v1062
        %v1099 = vpack.c.b16 %v1067, %v1063
        %v1100 = vpack.c.b16 %v1068, %v1064
        %1133 = vmatpush.bf16.msra.mxu0 %v1097
        %1134 = vmatpush.bf16.msra.mxu0 %v1093
        %1135 = vmatpush.bf16.msra.mxu0 %v1089
        %1136 = vmatpush.bf16.msra.mxu0 %v1085
        %1137 = vmatpush.bf16.msra.mxu0 %v1081
        %1138 = vmatpush.bf16.msra.mxu0 %v1077
        %1139 = vmatpush.bf16.msra.mxu0 %v1073
        %1140 = vmatpush.bf16.msra.mxu0 %v1069
        %1141 = vmatmul.bf16.gmra.mxu0 %v931
        %v1142 = vpop.f32.mrf.mxu0
        %v1143 = vadd.f32 %v969, %v1142
        %v1144 = vpop.f32.mrf.mxu0
        %1145 = vdwg.mxu0
        %1146 = vmatpush.bf16.msra.mxu0 %v1098
        %1147 = vmatpush.bf16.msra.mxu0 %v1094
        %1148 = vmatpush.bf16.msra.mxu0 %v1090
        %1149 = vmatpush.bf16.msra.mxu0 %v1086
        %1150 = vmatpush.bf16.msra.mxu0 %v1082
        %1151 = vmatpush.bf16.msra.mxu0 %v1078
        %1152 = vmatpush.bf16.msra.mxu0 %v1074
        %1153 = vmatpush.bf16.msra.mxu0 %v1070
        %1154 = vmatmul.bf16.gmra.mxu0 %v931
        %v1155 = vpop.f32.mrf.mxu0
        %v1156 = vadd.f32 %v970, %v1155
        %v1157 = vpop.f32.mrf.mxu0
        %1158 = vdwg.mxu0
        %1159 = vmatpush.bf16.msra.mxu0 %v1099
        %1160 = vmatpush.bf16.msra.mxu0 %v1095
        %1161 = vmatpush.bf16.msra.mxu0 %v1091
        %1162 = vmatpush.bf16.msra.mxu0 %v1087
        %1163 = vmatpush.bf16.msra.mxu0 %v1083
        %1164 = vmatpush.bf16.msra.mxu0 %v1079
        %1165 = vmatpush.bf16.msra.mxu0 %v1075
        %1166 = vmatpush.bf16.msra.mxu0 %v1071
        %1167 = vmatmul.bf16.gmra.mxu0 %v931
        %v1168 = vpop.f32.mrf.mxu0
        %v1169 = vadd.f32 %v971, %v1168
        %v1170 = vpop.f32.mrf.mxu0
        %1171 = vdwg.mxu0
        %1172 = vmatpush.bf16.msra.mxu0 %v1100
        %1173 = vmatpush.bf16.msra.mxu0 %v1096
        %1174 = vmatpush.bf16.msra.mxu0 %v1092
        %1175 = vmatpush.bf16.msra.mxu0 %v1088
        %1176 = vmatpush.bf16.msra.mxu0 %v1084
        %1177 = vmatpush.bf16.msra.mxu0 %v1080
        %1178 = vmatpush.bf16.msra.mxu0 %v1076
        %1179 = vmatpush.bf16.msra.mxu0 %v1072
        %1180 = vmatmul.bf16.gmra.mxu0 %v931
        %v1181 = vpop.f32.mrf.mxu0
        %v1182 = vadd.f32 %v972, %v1181
        %v1183 = vpop.f32.mrf.mxu0
        %1184 = vdwg.mxu0
        %v1185 = vxor.u32 %v1143, 2147483648
        %v1186 = vmul.f32 %v1185, 1.442695
        %v1187 = vpow.pop %v1186
        %v1188 = vadd.f32 %v1187, 1.0
        %v1189 = vrcp.pop %v1188
        %v1190 = vmul.f32 %v1188, %v1189
        %v1191 = vsub.f32 1.0, %v1190
        %v1192 = vmul.f32 %v1189, %v1191
        %v1193 = vadd.f32 %v1189, %v1192
        %vm1194 = vweird.f32 %v1188
        %vm1195 = vweird.f32 %v1189
        %vm1196 = vmor %vm1194, %vm1195
        %v1197 = vsel %vm1196, %v1189, %v1193
        %v1198 = vand.u32 2147483647, %v1188
        %vm1199 = vcmp.eq.f32.partialorder %v1198, 8.507059e+37
        %v1200 = vand.u32 %v1188, 2147483648
        %v1201 = vor.u32 1.1754944e-38, %v1200
        %v1202 = vsel %vm1199, %v1201, %v1197
        %v1203 = vmul.f32 1.0, %v1202
        %v1204 = vxor.u32 %v1156, 2147483648
        %v1205 = vmul.f32 %v1204, 1.442695
        %v1206 = vpow.pop %v1205
        %v1207 = vadd.f32 %v1206, 1.0
        %v1208 = vrcp.pop %v1207
        %v1209 = vmul.f32 %v1207, %v1208
        %v1210 = vsub.f32 1.0, %v1209
        %v1211 = vmul.f32 %v1208, %v1210
        %v1212 = vadd.f32 %v1208, %v1211
        %vm1213 = vweird.f32 %v1207
        %vm1214 = vweird.f32 %v1208
        %vm1215 = vmor %vm1213, %vm1214
        %v1216 = vsel %vm1215, %v1208, %v1212
        %v1217 = vand.u32 2147483647, %v1207
        %vm1218 = vcmp.eq.f32.partialorder %v1217, 8.507059e+37
        %v1219 = vand.u32 %v1207, 2147483648
        %v1220 = vor.u32 1.1754944e-38, %v1219
        %v1221 = vsel %vm1218, %v1220, %v1216
        %v1222 = vmul.f32 1.0, %v1221
        %v1223 = vtanh.pop %v1169
        %v1224 = vxor.u32 %v1182, 2147483648
        %v1225 = vmul.f32 %v1224, 1.442695
        %v1226 = vpow.pop %v1225
        %v1227 = vadd.f32 %v1226, 1.0
        %v1228 = vrcp.pop %v1227
        %v1229 = vmul.f32 %v1227, %v1228
        %v1230 = vsub.f32 1.0, %v1229
        %v1231 = vmul.f32 %v1228, %v1230
        %v1232 = vadd.f32 %v1228, %v1231
        %vm1233 = vweird.f32 %v1227
        %vm1234 = vweird.f32 %v1228
        %vm1235 = vmor %vm1233, %vm1234
        %v1236 = vsel %vm1235, %v1228, %v1232
        %v1237 = vand.u32 2147483647, %v1227
        %vm1238 = vcmp.eq.f32.partialorder %v1237, 8.507059e+37
        %v1239 = vand.u32 %v1227, 2147483648
        %v1240 = vor.u32 1.1754944e-38, %v1239
        %v1241 = vsel %vm1238, %v1240, %v1236
        %v1242 = vmul.f32 1.0, %v1241
        %v1243 = vmul.f32 %v1222, %v928
        %v1244 = vmul.f32 %v1203, %v1223
        %v1245 = vadd.f32 %v1243, %v1244
        %v1246 = vtanh.pop %v1245
        %v1247 = vmul.f32 %v1242, %v1246
        %v1248 = vpack.c.bf16 %v1247, %v1247
        %s1249 = scalar_lea.vmem %s267, 8 [#allocation12]
        %1250 = vst [vmem:[%s1249] sm:$0xf] %v1248
        %v1251 = vld [vmem:[#allocation2] sm:$0xff]
        %v1252 = vld [vmem:[#allocation2 + $0x8] sm:$0xff]
        %v1253 = vld [vmem:[#allocation2 + $0x10] sm:$0xff]
        %v1254 = vld [vmem:[#allocation2 + $0x18] sm:$0xff]
        %v1255 = vld [vmem:[#allocation2 + $0x20] sm:$0xff]
        %v1256 = vld [vmem:[#allocation2 + $0x28] sm:$0xff]
        %v1257 = vld [vmem:[#allocation2 + $0x30] sm:$0xff]
        %v1258 = vld [vmem:[#allocation2 + $0x38] sm:$0xff]
        %v1259 = vld [vmem:[#allocation2 + $0x40] sm:$0xff]
        %v1260 = vld [vmem:[#allocation2 + $0x48] sm:$0xff]
        %v1261 = vld [vmem:[#allocation2 + $0x50] sm:$0xff]
        %v1262 = vld [vmem:[#allocation2 + $0x58] sm:$0xff]
        %v1263 = vld [vmem:[#allocation2 + $0x60] sm:$0xff]
        %v1264 = vld [vmem:[#allocation2 + $0x68] sm:$0xff]
        %v1265 = vld [vmem:[#allocation2 + $0x70] sm:$0xff]
        %v1266 = vld [vmem:[#allocation2 + $0x78] sm:$0xff]
        %v1267 = vld [vmem:[#allocation2 + $0x80] sm:$0xff]
        %v1268 = vld [vmem:[#allocation2 + $0x88] sm:$0xff]
        %v1269 = vld [vmem:[#allocation2 + $0x90] sm:$0xff]
        %v1270 = vld [vmem:[#allocation2 + $0x98] sm:$0xff]
        %v1271 = vld [vmem:[#allocation2 + $0xa0] sm:$0xff]
        %v1272 = vld [vmem:[#allocation2 + $0xa8] sm:$0xff]
        %v1273 = vld [vmem:[#allocation2 + $0xb0] sm:$0xff]
        %v1274 = vld [vmem:[#allocation2 + $0xb8] sm:$0xff]
        %v1275 = vld [vmem:[#allocation2 + $0xc0] sm:$0xff]
        %v1276 = vld [vmem:[#allocation2 + $0xc8] sm:$0xff]
        %v1277 = vld [vmem:[#allocation2 + $0xd0] sm:$0xff]
        %v1278 = vld [vmem:[#allocation2 + $0xd8] sm:$0xff]
        %v1279 = vld [vmem:[#allocation2 + $0xe0] sm:$0xff]
        %v1280 = vld [vmem:[#allocation2 + $0xe8] sm:$0xff]
        %v1281 = vld [vmem:[#allocation2 + $0xf0] sm:$0xff]
        %v1282 = vld [vmem:[#allocation2 + $0xf8] sm:$0xff]
        %s1283 = scalar_lea.vmem %s234, 48 [#allocation6]
        %v1284 = vld [vmem:[%s1283] sm:$0xff]
        %v1285 = vld [vmem:[%s1283 + $0x8] sm:$0xff]
        %v1286 = vunpack.c.l.bf16 %v1284
        %v1287 = vunpack.c.h.bf16 %v1284
        %v1288 = vunpack.c.l.bf16 %v1285
        %v1289 = vunpack.c.h.bf16 %v1285
        %v1322 = vunpack.c.l.b16 %v1251
        %v1323 = vunpack.c.h.b16 %v1251
        %v1324 = vunpack.c.l.b16 %v1252
        %v1325 = vunpack.c.h.b16 %v1252
        %v1326 = vunpack.c.l.b16 %v1253
        %v1327 = vunpack.c.h.b16 %v1253
        %v1328 = vunpack.c.l.b16 %v1254
        %v1329 = vunpack.c.h.b16 %v1254
        %v1330 = vunpack.c.l.b16 %v1255
        %v1331 = vunpack.c.h.b16 %v1255
        %v1332 = vunpack.c.l.b16 %v1256
        %v1333 = vunpack.c.h.b16 %v1256
        %v1334 = vunpack.c.l.b16 %v1257
        %v1335 = vunpack.c.h.b16 %v1257
        %v1336 = vunpack.c.l.b16 %v1258
        %v1337 = vunpack.c.h.b16 %v1258
        %v1338 = vunpack.c.l.b16 %v1259
        %v1339 = vunpack.c.h.b16 %v1259
        %v1340 = vunpack.c.l.b16 %v1260
        %v1341 = vunpack.c.h.b16 %v1260
        %v1342 = vunpack.c.l.b16 %v1261
        %v1343 = vunpack.c.h.b16 %v1261
        %v1344 = vunpack.c.l.b16 %v1262
        %v1345 = vunpack.c.h.b16 %v1262
        %v1346 = vunpack.c.l.b16 %v1263
        %v1347 = vunpack.c.h.b16 %v1263
        %v1348 = vunpack.c.l.b16 %v1264
        %v1349 = vunpack.c.h.b16 %v1264
        %v1350 = vunpack.c.l.b16 %v1265
        %v1351 = vunpack.c.h.b16 %v1265
        %v1352 = vunpack.c.l.b16 %v1266
        %v1353 = vunpack.c.h.b16 %v1266
        %v1354 = vunpack.c.l.b16 %v1267
        %v1355 = vunpack.c.h.b16 %v1267
        %v1356 = vunpack.c.l.b16 %v1268
        %v1357 = vunpack.c.h.b16 %v1268
        %v1358 = vunpack.c.l.b16 %v1269
        %v1359 = vunpack.c.h.b16 %v1269
        %v1360 = vunpack.c.l.b16 %v1270
        %v1361 = vunpack.c.h.b16 %v1270
        %v1362 = vunpack.c.l.b16 %v1271
        %v1363 = vunpack.c.h.b16 %v1271
        %v1364 = vunpack.c.l.b16 %v1272
        %v1365 = vunpack.c.h.b16 %v1272
        %v1366 = vunpack.c.l.b16 %v1273
        %v1367 = vunpack.c.h.b16 %v1273
        %v1368 = vunpack.c.l.b16 %v1274
        %v1369 = vunpack.c.h.b16 %v1274
        %v1370 = vunpack.c.l.b16 %v1275
        %v1371 = vunpack.c.h.b16 %v1275
        %v1372 = vunpack.c.l.b16 %v1276
        %v1373 = vunpack.c.h.b16 %v1276
        %v1374 = vunpack.c.l.b16 %v1277
        %v1375 = vunpack.c.h.b16 %v1277
        %v1376 = vunpack.c.l.b16 %v1278
        %v1377 = vunpack.c.h.b16 %v1278
        %v1378 = vunpack.c.l.b16 %v1279
        %v1379 = vunpack.c.h.b16 %v1279
        %v1380 = vunpack.c.l.b16 %v1280
        %v1381 = vunpack.c.h.b16 %v1280
        %v1382 = vunpack.c.l.b16 %v1281
        %v1383 = vunpack.c.h.b16 %v1281
        %v1384 = vunpack.c.l.b16 %v1282
        %v1385 = vunpack.c.h.b16 %v1282
        %v1386 = vpack.c.b16 %v1326, %v1322
        %v1387 = vpack.c.b16 %v1327, %v1323
        %v1388 = vpack.c.b16 %v1328, %v1324
        %v1389 = vpack.c.b16 %v1329, %v1325
        %v1390 = vpack.c.b16 %v1334, %v1330
        %v1391 = vpack.c.b16 %v1335, %v1331
        %v1392 = vpack.c.b16 %v1336, %v1332
        %v1393 = vpack.c.b16 %v1337, %v1333
        %v1394 = vpack.c.b16 %v1342, %v1338
        %v1395 = vpack.c.b16 %v1343, %v1339
        %v1396 = vpack.c.b16 %v1344, %v1340
        %v1397 = vpack.c.b16 %v1345, %v1341
        %v1398 = vpack.c.b16 %v1350, %v1346
        %v1399 = vpack.c.b16 %v1351, %v1347
        %v1400 = vpack.c.b16 %v1352, %v1348
        %v1401 = vpack.c.b16 %v1353, %v1349
        %v1402 = vpack.c.b16 %v1358, %v1354
        %v1403 = vpack.c.b16 %v1359, %v1355
        %v1404 = vpack.c.b16 %v1360, %v1356
        %v1405 = vpack.c.b16 %v1361, %v1357
        %v1406 = vpack.c.b16 %v1366, %v1362
        %v1407 = vpack.c.b16 %v1367, %v1363
        %v1408 = vpack.c.b16 %v1368, %v1364
        %v1409 = vpack.c.b16 %v1369, %v1365
        %v1410 = vpack.c.b16 %v1374, %v1370
        %v1411 = vpack.c.b16 %v1375, %v1371
        %v1412 = vpack.c.b16 %v1376, %v1372
        %v1413 = vpack.c.b16 %v1377, %v1373
        %v1414 = vpack.c.b16 %v1382, %v1378
        %v1415 = vpack.c.b16 %v1383, %v1379
        %v1416 = vpack.c.b16 %v1384, %v1380
        %v1417 = vpack.c.b16 %v1385, %v1381
        %1450 = vmatpush.bf16.msra.mxu0 %v1414
        %1451 = vmatpush.bf16.msra.mxu0 %v1410
        %1452 = vmatpush.bf16.msra.mxu0 %v1406
        %1453 = vmatpush.bf16.msra.mxu0 %v1402
        %1454 = vmatpush.bf16.msra.mxu0 %v1398
        %1455 = vmatpush.bf16.msra.mxu0 %v1394
        %1456 = vmatpush.bf16.msra.mxu0 %v1390
        %1457 = vmatpush.bf16.msra.mxu0 %v1386
        %1458 = vmatmul.bf16.gmra.mxu0 %v1248
        %v1459 = vpop.f32.mrf.mxu0
        %v1460 = vadd.f32 %v1286, %v1459
        %v1461 = vpop.f32.mrf.mxu0
        %1462 = vdwg.mxu0
        %1463 = vmatpush.bf16.msra.mxu0 %v1415
        %1464 = vmatpush.bf16.msra.mxu0 %v1411
        %1465 = vmatpush.bf16.msra.mxu0 %v1407
        %1466 = vmatpush.bf16.msra.mxu0 %v1403
        %1467 = vmatpush.bf16.msra.mxu0 %v1399
        %1468 = vmatpush.bf16.msra.mxu0 %v1395
        %1469 = vmatpush.bf16.msra.mxu0 %v1391
        %1470 = vmatpush.bf16.msra.mxu0 %v1387
        %1471 = vmatmul.bf16.gmra.mxu0 %v1248
        %v1472 = vpop.f32.mrf.mxu0
        %v1473 = vadd.f32 %v1287, %v1472
        %v1474 = vpop.f32.mrf.mxu0
        %1475 = vdwg.mxu0
        %1476 = vmatpush.bf16.msra.mxu0 %v1416
        %1477 = vmatpush.bf16.msra.mxu0 %v1412
        %1478 = vmatpush.bf16.msra.mxu0 %v1408
        %1479 = vmatpush.bf16.msra.mxu0 %v1404
        %1480 = vmatpush.bf16.msra.mxu0 %v1400
        %1481 = vmatpush.bf16.msra.mxu0 %v1396
        %1482 = vmatpush.bf16.msra.mxu0 %v1392
        %1483 = vmatpush.bf16.msra.mxu0 %v1388
        %1484 = vmatmul.bf16.gmra.mxu0 %v1248
        %v1485 = vpop.f32.mrf.mxu0
        %v1486 = vadd.f32 %v1288, %v1485
        %v1487 = vpop.f32.mrf.mxu0
        %1488 = vdwg.mxu0
        %1489 = vmatpush.bf16.msra.mxu0 %v1417
        %1490 = vmatpush.bf16.msra.mxu0 %v1413
        %1491 = vmatpush.bf16.msra.mxu0 %v1409
        %1492 = vmatpush.bf16.msra.mxu0 %v1405
        %1493 = vmatpush.bf16.msra.mxu0 %v1401
        %1494 = vmatpush.bf16.msra.mxu0 %v1397
        %1495 = vmatpush.bf16.msra.mxu0 %v1393
        %1496 = vmatpush.bf16.msra.mxu0 %v1389
        %1497 = vmatmul.bf16.gmra.mxu0 %v1248
        %v1498 = vpop.f32.mrf.mxu0
        %v1499 = vadd.f32 %v1289, %v1498
        %v1500 = vpop.f32.mrf.mxu0
        %1501 = vdwg.mxu0
        %v1502 = vxor.u32 %v1460, 2147483648
        %v1503 = vmul.f32 %v1502, 1.442695
        %v1504 = vpow.pop %v1503
        %v1505 = vadd.f32 %v1504, 1.0
        %v1506 = vrcp.pop %v1505
        %v1507 = vmul.f32 %v1505, %v1506
        %v1508 = vsub.f32 1.0, %v1507
        %v1509 = vmul.f32 %v1506, %v1508
        %v1510 = vadd.f32 %v1506, %v1509
        %vm1511 = vweird.f32 %v1505
        %vm1512 = vweird.f32 %v1506
        %vm1513 = vmor %vm1511, %vm1512
        %v1514 = vsel %vm1513, %v1506, %v1510
        %v1515 = vand.u32 2147483647, %v1505
        %vm1516 = vcmp.eq.f32.partialorder %v1515, 8.507059e+37
        %v1517 = vand.u32 %v1505, 2147483648
        %v1518 = vor.u32 1.1754944e-38, %v1517
        %v1519 = vsel %vm1516, %v1518, %v1514
        %v1520 = vmul.f32 1.0, %v1519
        %v1521 = vxor.u32 %v1473, 2147483648
        %v1522 = vmul.f32 %v1521, 1.442695
        %v1523 = vpow.pop %v1522
        %v1524 = vadd.f32 %v1523, 1.0
        %v1525 = vrcp.pop %v1524
        %v1526 = vmul.f32 %v1524, %v1525
        %v1527 = vsub.f32 1.0, %v1526
        %v1528 = vmul.f32 %v1525, %v1527
        %v1529 = vadd.f32 %v1525, %v1528
        %vm1530 = vweird.f32 %v1524
        %vm1531 = vweird.f32 %v1525
        %vm1532 = vmor %vm1530, %vm1531
        %v1533 = vsel %vm1532, %v1525, %v1529
        %v1534 = vand.u32 2147483647, %v1524
        %vm1535 = vcmp.eq.f32.partialorder %v1534, 8.507059e+37
        %v1536 = vand.u32 %v1524, 2147483648
        %v1537 = vor.u32 1.1754944e-38, %v1536
        %v1538 = vsel %vm1535, %v1537, %v1533
        %v1539 = vmul.f32 1.0, %v1538
        %v1540 = vtanh.pop %v1486
        %v1541 = vxor.u32 %v1499, 2147483648
        %v1542 = vmul.f32 %v1541, 1.442695
        %v1543 = vpow.pop %v1542
        %v1544 = vadd.f32 %v1543, 1.0
        %v1545 = vrcp.pop %v1544
        %v1546 = vmul.f32 %v1544, %v1545
        %v1547 = vsub.f32 1.0, %v1546
        %v1548 = vmul.f32 %v1545, %v1547
        %v1549 = vadd.f32 %v1545, %v1548
        %vm1550 = vweird.f32 %v1544
        %vm1551 = vweird.f32 %v1545
        %vm1552 = vmor %vm1550, %vm1551
        %v1553 = vsel %vm1552, %v1545, %v1549
        %v1554 = vand.u32 2147483647, %v1544
        %vm1555 = vcmp.eq.f32.partialorder %v1554, 8.507059e+37
        %v1556 = vand.u32 %v1544, 2147483648
        %v1557 = vor.u32 1.1754944e-38, %v1556
        %v1558 = vsel %vm1555, %v1557, %v1553
        %v1559 = vmul.f32 1.0, %v1558
        %v1560 = vmul.f32 %v1539, %v1245
        %v1561 = vmul.f32 %v1520, %v1540
        %v1562 = vadd.f32 %v1560, %v1561
        %v1563 = vtanh.pop %v1562
        %v1564 = vmul.f32 %v1559, %v1563
        %v1565 = vpack.c.bf16 %v1564, %v1564
        %s1566 = scalar_lea.vmem %s267, 12 [#allocation12]
        %1567 = vst [vmem:[%s1566] sm:$0xf] %v1565
        %1568 = vst [vmem:[#allocation3] sm:$0xff] %v1564
        %1569 = vst [vmem:[#allocation4] sm:$0xff] %v1562
        %p1570 = scmp.eq.s32.totalorder %s26, 1
        // Predicated region
        $region53: #{tpu_custom_call.1} parent=31 // pred_check
          %p1571 = pneg %p1570
        $region54: #{tpu_custom_call.1} parent=31 // pred_check_branch
          %1573 = sbr.rel (%p1571) target = $region56
        $region55: #{tpu_custom_call.1} parent=31 // pred_region
          %1574 = vst [vmem:[#allocation13] sm:$0xff] %v1564
          %1575 = vst [vmem:[#allocation15] sm:$0xff] %v1562
        $region56: #{tpu_custom_call.1} parent=31 // pred_fallthru
          _
        %s1576 = sand.u32 %s102, 1
        %s1577 = scalar_lea.sflag [#allocation8], %s1576
        %s1578 = sand.u32 %s102, 1
        %s1579 = smul.addr %s1578, 16
        %s1580 = scalar_lea.vmem [#allocation12], %s1579
        // Predicated region
        $region57: #{tpu_custom_call.1} parent=31 // pred_check
          %p1581 = pneg %p112
        $region58: #{tpu_custom_call.1} parent=31 // pred_check_branch
          %1583 = sbr.rel (%p1581) target = $region60
        $region59: #{tpu_custom_call.1} parent=31 // pred_region
          %s1584 = smul.u32 4, %s26
          %1586 = vsyncadd %s1577, 0
          %s1587 = smul.addr %s1584, 4
          %s1588 = scalar_lea.hbm %s4, %s1587
          %s1589 = sshll.u32 %s1580, 4
          %s1590 = int_to_ptr.vmem [resolvable:$true] %s1589
          %s1591 = sshll.u32 %s1588, 4
          %s1592 = int_to_ptr.hbm [resolvable:$true] %s1591
          %1597 = dma.vmem_to_hbm [thread:$0]  %s1590, 256, %s1592, %s1577, 64, 64, 4
        $region60: #{tpu_custom_call.1} parent=31 // pred_fallthru
          _
        // Predicated region
        $region61: #{tpu_custom_call.1} parent=31 // pred_check
          %p1598 = pneg %p133
        $region62: #{tpu_custom_call.1} parent=31 // pred_check_branch
          %1600 = sbr.rel (%p1598) target = $region64
        $region63: #{tpu_custom_call.1} parent=31 // pred_region
          %1602 = vsyncadd [#allocation14], 0
          %s1604 = sshll.u32 [#allocation13], 4
          %s1605 = int_to_ptr.vmem [resolvable:$true] %s1604
          %s1606 = sshll.u32 %s5, 4
          %s1607 = int_to_ptr.hbm [resolvable:$true] %s1606
          %1609 = dma.vmem_to_hbm [thread:$0]  %s1605, 128, %s1607, [#allocation14]
        $region64: #{tpu_custom_call.1} parent=31 // pred_fallthru
          _
        // Predicated region
        $region65: #{tpu_custom_call.1} parent=31 // pred_check
          %p1610 = pneg %p154
        $region66: #{tpu_custom_call.1} parent=31 // pred_check_branch
          %1612 = sbr.rel (%p1610) target = $region68
        $region67: #{tpu_custom_call.1} parent=31 // pred_region
          %1614 = vsyncadd [#allocation14], 0
          %s1616 = sshll.u32 [#allocation15], 4
          %s1617 = int_to_ptr.vmem [resolvable:$true] %s1616
          %s1618 = sshll.u32 %s6, 4
          %s1619 = int_to_ptr.hbm [resolvable:$true] %s1618
          %1621 = dma.vmem_to_hbm [thread:$0]  %s1617, 128, %s1619, [#allocation14]
        $region68: #{tpu_custom_call.1} parent=31 // pred_fallthru
          _
        // Predicated region
        $region69: #{tpu_custom_call.1} parent=31 // pred_check
          %p1622 = pneg %p133
        $region70: #{tpu_custom_call.1} parent=31 // pred_check_branch
          %1624 = sbr.rel (%p1622) target = $region72
        $region71: #{tpu_custom_call.1} parent=31 // pred_region
          %1626 = dma.done [#allocation14], 128
        $region72: #{tpu_custom_call.1} parent=31 // pred_fallthru
          _
        // Predicated region
        $region73: #{tpu_custom_call.1} parent=31 // pred_check
          %p1627 = pneg %p154
        $region74: #{tpu_custom_call.1} parent=31 // pred_check_branch
          %1629 = sbr.rel (%p1627) target = $region76
        $region75: #{tpu_custom_call.1} parent=31 // pred_region
          %1631 = dma.done [#allocation14], 128
        $region76: #{tpu_custom_call.1} parent=31 // pred_fallthru
          _
      $region32: #{tpu_custom_call.1} parent=5 // pred_fallthru
        _
      %p1632 = scmp.le.s32.totalorder 2, %s21
      // Predicated region
      $region77: #{tpu_custom_call.1} parent=5 // pred_check
        %p1633 = pneg %p1632
      $region78: #{tpu_custom_call.1} parent=5 // pred_check_branch
        %1635 = sbr.rel (%p1633) target = $region80
      $region79: #{tpu_custom_call.1} parent=5 // pred_region
        %s1636 = ssub.s32 %s21, 2
        // Predicated region
        $region81: #{tpu_custom_call.1} parent=79 // pred_check
          %p1637 = pneg %p118
        $region82: #{tpu_custom_call.1} parent=79 // pred_check_branch
          %1639 = sbr.rel (%p1637) target = $region84
        $region83: #{tpu_custom_call.1} parent=79 // pred_region
          %s1640 = sand.u32 %s103, 1
          %s1641 = scalar_lea.sflag [#allocation8], %s1640
          %s1642 = sand.u32 %s103, 1
          %s1643 = smul.addr %s1642, 16
          %s1644 = scalar_lea.vmem [#allocation12], %s1643
          %1646 = dma.done %s1641, 256
        $region84: #{tpu_custom_call.1} parent=79 // pred_fallthru
          _
      $region80: #{tpu_custom_call.1} parent=5 // pred_fallthru
        _
    $region6: #{tpu_custom_call.1} parent=1 // loop_footer
      %s25 = sadd.s32 1, %s21
    $region7: #{tpu_custom_call.1} parent=1 // loop_footer_branch
      %20 = sbr.rel target = $region3
    $region8: #{tpu_custom_call.1} parent=1 // loop_exit
      _
    %1647 = vsyncpa [#allocation7], 1
    %s1648 = scalar_lea.sflag [#allocation7], 1
    %1649 = vsyncpa %s1648, 1
    %1650 = vsyncpa [#allocation10], 1
    %1651 = vsyncpa [#allocation8], 1
    %s1652 = scalar_lea.sflag [#allocation8], 1
    %1653 = vsyncpa %s1652, 1
    %1654 = vsyncpa [#allocation14], 1
  %1655 = vsyncmov [#allocation5]
  %s1656 = vpop.sfrf %1655
  %p1657 = scmp.eq.s32.totalorder %s1656, 0
  %p1658 = pneg %p1657
  %1660 = shalt.err (%p1658)

</llo_original>
